<compile_context>
chip_gen: v6e
topology: v6e:2x2x1
jax: 0.10.0
libtpu: 0.0.40
codegen_flags: <defaults>
</compile_context>

<pallas_src>
import functools

import jax
import jax.numpy as jnp
from jax import lax
from jax.experimental import pallas as pl
from jax.experimental.pallas import tpu as pltpu


# ----------------------------- Pallas kernels ------------------------------

def _vmem():
    return pl.BlockSpec(memory_space=pltpu.MemorySpace.VMEM)


def _vmem_specs(n):
    return [_vmem() for _ in range(n)]


def _conv_relu_kernel(patch_ref, w_ref, o_ref):
    acc = jnp.dot(patch_ref[...], w_ref[...], preferred_element_type=jnp.float32)
    o_ref[...] = jnp.maximum(acc, 0.0)


def _conv_bn_relu_kernel(patch_ref, w_ref, gamma_ref, beta_ref, o_ref, *, eps):
    # im2col matmul with fused train-mode BatchNorm2d (batch stats, biased
    # variance) + ReLU epilogue.  patch: (N*Ho*Wo, K), w: (K, Cout).
    acc = jnp.dot(patch_ref[...], w_ref[...], preferred_element_type=jnp.float32)
    mean = jnp.mean(acc, axis=0, keepdims=True)
    var = jnp.mean(jnp.square(acc - mean), axis=0, keepdims=True)
    y = (acc - mean) * (gamma_ref[...] * lax.rsqrt(var + eps)) + beta_ref[...]
    o_ref[...] = jnp.maximum(y, 0.0)


def _fc_kernel(x_ref, w_ref, b_ref, o_ref, *, normalize):
    # w is in torch Linear layout (Z, F); contract over F in-kernel (x @ w.T).
    z = lax.dot_general(x_ref[...], w_ref[...],
                        dimension_numbers=(((1,), (1,)), ((), ())),
                        preferred_element_type=jnp.float32)
    z = z + b_ref[...]
    if normalize:
        # F.normalize(z, p=2, dim=1, eps=1e-12)
        nrm = jnp.sqrt(jnp.sum(z * z, axis=-1, keepdims=True))
        z = z / jnp.maximum(nrm, 1e-12)
    o_ref[...] = z


# ------------------------------- JAX glue -----------------------------------

def _im2col(x_nhwc, kh, kw, stride, pad):
    N, H, W, C = x_nhwc.shape
    xp = jnp.pad(x_nhwc, ((0, 0), (pad, pad), (pad, pad), (0, 0)))
    Ho = (H + 2 * pad - kh) // stride + 1
    Wo = (W + 2 * pad - kw) // stride + 1
    cols = [xp[:, i:i + stride * Ho:stride, j:j + stride * Wo:stride, :]
            for i in range(kh) for j in range(kw)]
    p = jnp.stack(cols, axis=3)                       # (N, Ho, Wo, kh*kw, C)
    return p.reshape(N * Ho * Wo, kh * kw * C), (N, Ho, Wo)


def _weight_matrix(w_oihw):
    # rows ordered (ki, kj, cin) to match patch column ordering
    Cout, Cin, kh, kw = w_oihw.shape
    return jnp.transpose(w_oihw, (2, 3, 1, 0)).reshape(kh * kw * Cin, Cout)


def conv_relu(x_nhwc, w_oihw, stride, pad):
    Cout = w_oihw.shape[0]
    patches, (N, Ho, Wo) = _im2col(x_nhwc, w_oihw.shape[2], w_oihw.shape[3],
                                   stride, pad)
    out = pl.pallas_call(
        _conv_relu_kernel,
        out_shape=jax.ShapeDtypeStruct((patches.shape[0], Cout), jnp.float32),
        in_specs=_vmem_specs(2),
        out_specs=_vmem(),
    )(patches, _weight_matrix(w_oihw))
    return out.reshape(N, Ho, Wo, Cout)


def conv_bn_relu(x_nhwc, w_oihw, gamma, beta, stride, pad, eps=1e-5):
    Cout = w_oihw.shape[0]
    patches, (N, Ho, Wo) = _im2col(x_nhwc, w_oihw.shape[2], w_oihw.shape[3],
                                   stride, pad)
    out = pl.pallas_call(
        functools.partial(_conv_bn_relu_kernel, eps=eps),
        out_shape=jax.ShapeDtypeStruct((patches.shape[0], Cout), jnp.float32),
        in_specs=_vmem_specs(4),
        out_specs=_vmem(),
    )(patches, _weight_matrix(w_oihw), gamma.reshape(1, -1), beta.reshape(1, -1))
    return out.reshape(N, Ho, Wo, Cout)


def pallas_fc(x, w, b, normalize):
    """x: (N, F), w: (Z, F) torch Linear layout, b: (Z,)."""
    return pl.pallas_call(
        functools.partial(_fc_kernel, normalize=normalize),
        out_shape=jax.ShapeDtypeStruct((x.shape[0], w.shape[0]), jnp.float32),
        in_specs=_vmem_specs(3),
        out_specs=_vmem(),
    )(x, w, b.reshape(1, -1))


# --------------------------- ConvEncoder (32-branch) -------------------------

def init_params(key, c_dim, nf, z_dim, img_size):
    assert img_size == 32
    ks = jax.random.split(key, 18)

    def w(k, shape, fan_in):
        return (jax.random.uniform(k, shape, jnp.float32, -1.0, 1.0)
                / jnp.sqrt(jnp.float32(fan_in)))

    p = {}
    p["w1"] = w(ks[0], (nf, c_dim, 4, 4), c_dim * 16)
    p["w2"] = w(ks[1], (2 * nf, nf, 4, 4), nf * 16)
    p["w3"] = w(ks[2], (2 * nf, 2 * nf, 3, 3), 2 * nf * 9)
    p["w4"] = w(ks[3], (2 * nf, 2 * nf, 3, 3), 2 * nf * 9)
    p["w5"] = w(ks[4], (2 * nf, 2 * nf, 4, 4), 2 * nf * 16)
    p["w6"] = w(ks[5], (nf, 2 * nf, 4, 4), 2 * nf * 16)
    bn_ch = {2: 2 * nf, 3: 2 * nf, 4: 2 * nf, 5: 2 * nf, 6: nf}
    for i, (idx, c) in enumerate(bn_ch.items()):
        p[f"g{idx}"] = 1.0 + 0.1 * jax.random.normal(ks[6 + i], (c,), jnp.float32)
        p[f"b{idx}"] = 0.1 * jax.random.normal(ks[11 + i], (c,), jnp.float32)
    feat = nf * (img_size // 2 ** 4) * (img_size // 2 ** 4)
    p["fc_w"] = w(ks[16], (z_dim, feat), feat)
    p["fc_b"] = 0.1 * jax.random.normal(ks[17], (z_dim,), jnp.float32)
    return p


@functools.partial(jax.jit, static_argnames=("norm_ae_flag",))
def conv_encoder_forward(x_nchw, params, norm_ae_flag):
    x = jnp.transpose(x_nchw, (0, 2, 3, 1)).astype(jnp.float32)  # NCHW -> NHWC

    # Conv1 + ReLU (no BN), bias=False
    x = conv_relu(x, params["w1"], stride=2, pad=1)

    # Conv2..Conv6, each a fused matmul + BatchNorm2d + ReLU kernel
    layer_cfg = [(2, 2, 1), (3, 1, 1), (4, 1, 1), (5, 2, 1), (6, 2, 1)]
    for idx, stride, pad in layer_cfg:
        x = conv_bn_relu(x, params[f"w{idx}"], params[f"g{idx}"],
                         params[f"b{idx}"], stride, pad)

    # torch: x.view(x.size(0), -1) on an NCHW tensor
    N = x.shape[0]
    x = jnp.transpose(x, (0, 3, 1, 2)).reshape(N, -1)

    return pallas_fc(x, params["fc_w"], params["fc_b"],
                     normalize=(norm_ae_flag == 1))


# ------------------------------------ main -----------------------------------

if __name__ == "__main__":
    key = jax.random.PRNGKey(0)
    k_x, k_p = jax.random.split(key)

    batch, c_dim, img_size = 2, 3, 32
    num_filters, z_dim, norm_ae_flag = 16, 8, 1

    x = jax.random.normal(k_x, (batch, c_dim, img_size, img_size), jnp.float32)
    params = init_params(k_p, c_dim, num_filters, z_dim, img_size)

    z = conv_encoder_forward(x, params, norm_ae_flag)
    z = jax.block_until_ready(z)

    assert z.shape == (batch, z_dim)
    assert bool(jnp.all(jnp.isfinite(z)))
    print("KERNEL_OK")
</pallas_src>

<mosaic_0001>
module attributes {stable_mosaic.version = 11 : i64} {
  func.func @_conv_relu_kernel(%arg0: memref<512x48xf32, #tpu.memory_space<vmem>>, %arg1: memref<48x16xf32, #tpu.memory_space<vmem>>, %arg2: memref<512x16xf32, #tpu.memory_space<vmem>>) attributes {dimension_semantics = [], scalar_prefetch = 0 : i64, scratch_operands = 0 : i64, tpu.core_type = #tpu.core_type<tc>} {
    %c0 = arith.constant 0 : index
    %c0_0 = arith.constant 0 : index
    %0 = vector.load %arg0[%c0, %c0_0] : memref<512x48xf32, #tpu.memory_space<vmem>>, vector<512x48xf32>
    %c0_1 = arith.constant 0 : index
    %c0_2 = arith.constant 0 : index
    %1 = vector.load %arg1[%c0_1, %c0_2] : memref<48x16xf32, #tpu.memory_space<vmem>>, vector<48x16xf32>
    %cst = arith.constant dense<0.000000e+00> : vector<512x16xf32>
    %2 = tpu.matmul %0, %1, %cst {dimension_numbers = #tpu.dot_dimension_numbers<[1], [0], [0], [1], [0, 0, 1, 1], [], []>} : vector<512x48xf32>, vector<48x16xf32>, vector<512x16xf32> -> vector<512x16xf32>
    %cst_3 = arith.constant 0.000000e+00 : f32
    %3 = vector.broadcast %cst_3 : f32 to vector<512x16xf32>
    %4 = arith.maximumf %2, %3 : vector<512x16xf32>
    %c0_4 = arith.constant 0 : index
    %c0_5 = arith.constant 0 : index
    %5 = vector.load %arg2[%c0_4, %c0_5] : memref<512x16xf32, #tpu.memory_space<vmem>>, vector<512x16xf32>
    tpu.vector_store %arg2[%c0_4, %c0_5], %4 {strides = array<i32>} : memref<512x16xf32, #tpu.memory_space<vmem>>, vector<512x16xf32>,
    return
  }
}

module attributes {stable_mosaic.version = 11 : i64} {
  func.func @_conv_bn_relu_kernel(%arg0: memref<128x256xf32, #tpu.memory_space<vmem>>, %arg1: memref<256x32xf32, #tpu.memory_space<vmem>>, %arg2: memref<1x32xf32, #tpu.memory_space<vmem>>, %arg3: memref<1x32xf32, #tpu.memory_space<vmem>>, %arg4: memref<128x32xf32, #tpu.memory_space<vmem>>) attributes {dimension_semantics = [], scalar_prefetch = 0 : i64, scratch_operands = 0 : i64, tpu.core_type = #tpu.core_type<tc>} {
    %c0 = arith.constant 0 : index
    %c0_0 = arith.constant 0 : index
    %0 = vector.load %arg0[%c0, %c0_0] : memref<128x256xf32, #tpu.memory_space<vmem>>, vector<128x256xf32>
    %c0_1 = arith.constant 0 : index
    %c0_2 = arith.constant 0 : index
    %1 = vector.load %arg1[%c0_1, %c0_2] : memref<256x32xf32, #tpu.memory_space<vmem>>, vector<256x32xf32>
    %cst = arith.constant dense<0.000000e+00> : vector<128x32xf32>
    %2 = tpu.matmul %0, %1, %cst {dimension_numbers = #tpu.dot_dimension_numbers<[1], [0], [0], [1], [0, 0, 1, 1], [], []>} : vector<128x256xf32>, vector<256x32xf32>, vector<128x32xf32> -> vector<128x32xf32>
    %cst_3 = arith.constant dense<0.000000e+00> : vector<32xf32>
    %3 = vector.multi_reduction <add>, %2, %cst_3 [0] : vector<128x32xf32> to vector<32xf32>
    %4 = vector.shape_cast %3 : vector<32xf32> to vector<1x32xf32>
    %cst_4 = arith.constant 1.280000e+02 : f32
    %5 = vector.broadcast %cst_4 : f32 to vector<1x32xf32>
    %6 = arith.divf %4, %5 : vector<1x32xf32>
    %7 = vector.broadcast %6 : vector<1x32xf32> to vector<128x32xf32>
    %8 = arith.subf %2, %7 : vector<128x32xf32>
    %9 = arith.mulf %8, %8 : vector<128x32xf32>
    %cst_5 = arith.constant dense<0.000000e+00> : vector<32xf32>
    %10 = vector.multi_reduction <add>, %9, %cst_5 [0] : vector<128x32xf32> to vector<32xf32>
    %11 = vector.shape_cast %10 : vector<32xf32> to vector<1x32xf32>
    %cst_6 = arith.constant 1.280000e+02 : f32
    %12 = vector.broadcast %cst_6 : f32 to vector<1x32xf32>
    %13 = arith.divf %11, %12 : vector<1x32xf32>
    %14 = vector.broadcast %6 : vector<1x32xf32> to vector<128x32xf32>
    %15 = arith.subf %2, %14 : vector<128x32xf32>
    %c0_7 = arith.constant 0 : index
    %c0_8 = arith.constant 0 : index
    %16 = vector.load %arg2[%c0_7, %c0_8] : memref<1x32xf32, #tpu.memory_space<vmem>>, vector<1x32xf32>
    %cst_9 = arith.constant 9.99999974E-6 : f32
    %17 = vector.broadcast %cst_9 : f32 to vector<1x32xf32>
    %18 = arith.addf %13, %17 : vector<1x32xf32>
    %19 = math.rsqrt %18 : vector<1x32xf32>
    %20 = arith.mulf %16, %19 : vector<1x32xf32>
    %21 = vector.broadcast %20 : vector<1x32xf32> to vector<128x32xf32>
    %22 = arith.mulf %15, %21 : vector<128x32xf32>
    %c0_10 = arith.constant 0 : index
    %c0_11 = arith.constant 0 : index
    %23 = vector.load %arg3[%c0_10, %c0_11] : memref<1x32xf32, #tpu.memory_space<vmem>>, vector<1x32xf32>
    %24 = vector.broadcast %23 : vector<1x32xf32> to vector<128x32xf32>
    %25 = arith.addf %22, %24 : vector<128x32xf32>
    %cst_12 = arith.constant 0.000000e+00 : f32
    %26 = vector.broadcast %cst_12 : f32 to vector<128x32xf32>
    %27 = arith.maximumf %25, %26 : vector<128x32xf32>
    %c0_13 = arith.constant 0 : index
    %c0_14 = arith.constant 0 : index
    %28 = vector.load %arg4[%c0_13, %c0_14] : memref<128x32xf32, #tpu.memory_space<vmem>>, vector<128x32xf32>
    tpu.vector_store %arg4[%c0_13, %c0_14], %27 {strides = array<i32>} : memref<128x32xf32, #tpu.memory_space<vmem>>, vector<128x32xf32>,
    return
  }
}

module attributes {stable_mosaic.version = 11 : i64} {
  func.func @_conv_bn_relu_kernel(%arg0: memref<128x288xf32, #tpu.memory_space<vmem>>, %arg1: memref<288x32xf32, #tpu.memory_space<vmem>>, %arg2: memref<1x32xf32, #tpu.memory_space<vmem>>, %arg3: memref<1x32xf32, #tpu.memory_space<vmem>>, %arg4: memref<128x32xf32, #tpu.memory_space<vmem>>) attributes {dimension_semantics = [], scalar_prefetch = 0 : i64, scratch_operands = 0 : i64, tpu.core_type = #tpu.core_type<tc>} {
    %c0 = arith.constant 0 : index
    %c0_0 = arith.constant 0 : index
    %0 = vector.load %arg0[%c0, %c0_0] : memref<128x288xf32, #tpu.memory_space<vmem>>, vector<128x288xf32>
    %c0_1 = arith.constant 0 : index
    %c0_2 = arith.constant 0 : index
    %1 = vector.load %arg1[%c0_1, %c0_2] : memref<288x32xf32, #tpu.memory_space<vmem>>, vector<288x32xf32>
    %cst = arith.constant dense<0.000000e+00> : vector<128x32xf32>
    %2 = tpu.matmul %0, %1, %cst {dimension_numbers = #tpu.dot_dimension_numbers<[1], [0], [0], [1], [0, 0, 1, 1], [], []>} : vector<128x288xf32>, vector<288x32xf32>, vector<128x32xf32> -> vector<128x32xf32>
    %cst_3 = arith.constant dense<0.000000e+00> : vector<32xf32>
    %3 = vector.multi_reduction <add>, %2, %cst_3 [0] : vector<128x32xf32> to vector<32xf32>
    %4 = vector.shape_cast %3 : vector<32xf32> to vector<1x32xf32>
    %cst_4 = arith.constant 1.280000e+02 : f32
    %5 = vector.broadcast %cst_4 : f32 to vector<1x32xf32>
    %6 = arith.divf %4, %5 : vector<1x32xf32>
    %7 = vector.broadcast %6 : vector<1x32xf32> to vector<128x32xf32>
    %8 = arith.subf %2, %7 : vector<128x32xf32>
    %9 = arith.mulf %8, %8 : vector<128x32xf32>
    %cst_5 = arith.constant dense<0.000000e+00> : vector<32xf32>
    %10 = vector.multi_reduction <add>, %9, %cst_5 [0] : vector<128x32xf32> to vector<32xf32>
    %11 = vector.shape_cast %10 : vector<32xf32> to vector<1x32xf32>
    %cst_6 = arith.constant 1.280000e+02 : f32
    %12 = vector.broadcast %cst_6 : f32 to vector<1x32xf32>
    %13 = arith.divf %11, %12 : vector<1x32xf32>
    %14 = vector.broadcast %6 : vector<1x32xf32> to vector<128x32xf32>
    %15 = arith.subf %2, %14 : vector<128x32xf32>
    %c0_7 = arith.constant 0 : index
    %c0_8 = arith.constant 0 : index
    %16 = vector.load %arg2[%c0_7, %c0_8] : memref<1x32xf32, #tpu.memory_space<vmem>>, vector<1x32xf32>
    %cst_9 = arith.constant 9.99999974E-6 : f32
    %17 = vector.broadcast %cst_9 : f32 to vector<1x32xf32>
    %18 = arith.addf %13, %17 : vector<1x32xf32>
    %19 = math.rsqrt %18 : vector<1x32xf32>
    %20 = arith.mulf %16, %19 : vector<1x32xf32>
    %21 = vector.broadcast %20 : vector<1x32xf32> to vector<128x32xf32>
    %22 = arith.mulf %15, %21 : vector<128x32xf32>
    %c0_10 = arith.constant 0 : index
    %c0_11 = arith.constant 0 : index
    %23 = vector.load %arg3[%c0_10, %c0_11] : memref<1x32xf32, #tpu.memory_space<vmem>>, vector<1x32xf32>
    %24 = vector.broadcast %23 : vector<1x32xf32> to vector<128x32xf32>
    %25 = arith.addf %22, %24 : vector<128x32xf32>
    %cst_12 = arith.constant 0.000000e+00 : f32
    %26 = vector.broadcast %cst_12 : f32 to vector<128x32xf32>
    %27 = arith.maximumf %25, %26 : vector<128x32xf32>
    %c0_13 = arith.constant 0 : index
    %c0_14 = arith.constant 0 : index
    %28 = vector.load %arg4[%c0_13, %c0_14] : memref<128x32xf32, #tpu.memory_space<vmem>>, vector<128x32xf32>
    tpu.vector_store %arg4[%c0_13, %c0_14], %27 {strides = array<i32>} : memref<128x32xf32, #tpu.memory_space<vmem>>, vector<128x32xf32>,
    return
  }
}

module attributes {stable_mosaic.version = 11 : i64} {
  func.func @_conv_bn_relu_kernel(%arg0: memref<32x512xf32, #tpu.memory_space<vmem>>, %arg1: memref<512x32xf32, #tpu.memory_space<vmem>>, %arg2: memref<1x32xf32, #tpu.memory_space<vmem>>, %arg3: memref<1x32xf32, #tpu.memory_space<vmem>>, %arg4: memref<32x32xf32, #tpu.memory_space<vmem>>) attributes {dimension_semantics = [], scalar_prefetch = 0 : i64, scratch_operands = 0 : i64, tpu.core_type = #tpu.core_type<tc>} {
    %c0 = arith.constant 0 : index
    %c0_0 = arith.constant 0 : index
    %0 = vector.load %arg0[%c0, %c0_0] : memref<32x512xf32, #tpu.memory_space<vmem>>, vector<32x512xf32>
    %c0_1 = arith.constant 0 : index
    %c0_2 = arith.constant 0 : index
    %1 = vector.load %arg1[%c0_1, %c0_2] : memref<512x32xf32, #tpu.memory_space<vmem>>, vector<512x32xf32>
    %cst = arith.constant dense<0.000000e+00> : vector<32x32xf32>
    %2 = tpu.matmul %0, %1, %cst {dimension_numbers = #tpu.dot_dimension_numbers<[1], [0], [0], [1], [0, 0, 1, 1], [], []>} : vector<32x512xf32>, vector<512x32xf32>, vector<32x32xf32> -> vector<32x32xf32>
    %cst_3 = arith.constant dense<0.000000e+00> : vector<32xf32>
    %3 = vector.multi_reduction <add>, %2, %cst_3 [0] : vector<32x32xf32> to vector<32xf32>
    %4 = vector.shape_cast %3 : vector<32xf32> to vector<1x32xf32>
    %cst_4 = arith.constant 3.200000e+01 : f32
    %5 = vector.broadcast %cst_4 : f32 to vector<1x32xf32>
    %6 = arith.divf %4, %5 : vector<1x32xf32>
    %7 = vector.broadcast %6 : vector<1x32xf32> to vector<32x32xf32>
    %8 = arith.subf %2, %7 : vector<32x32xf32>
    %9 = arith.mulf %8, %8 : vector<32x32xf32>
    %cst_5 = arith.constant dense<0.000000e+00> : vector<32xf32>
    %10 = vector.multi_reduction <add>, %9, %cst_5 [0] : vector<32x32xf32> to vector<32xf32>
    %11 = vector.shape_cast %10 : vector<32xf32> to vector<1x32xf32>
    %cst_6 = arith.constant 3.200000e+01 : f32
    %12 = vector.broadcast %cst_6 : f32 to vector<1x32xf32>
    %13 = arith.divf %11, %12 : vector<1x32xf32>
    %14 = vector.broadcast %6 : vector<1x32xf32> to vector<32x32xf32>
    %15 = arith.subf %2, %14 : vector<32x32xf32>
    %c0_7 = arith.constant 0 : index
    %c0_8 = arith.constant 0 : index
    %16 = vector.load %arg2[%c0_7, %c0_8] : memref<1x32xf32, #tpu.memory_space<vmem>>, vector<1x32xf32>
    %cst_9 = arith.constant 9.99999974E-6 : f32
    %17 = vector.broadcast %cst_9 : f32 to vector<1x32xf32>
    %18 = arith.addf %13, %17 : vector<1x32xf32>
    %19 = math.rsqrt %18 : vector<1x32xf32>
    %20 = arith.mulf %16, %19 : vector<1x32xf32>
    %21 = vector.broadcast %20 : vector<1x32xf32> to vector<32x32xf32>
    %22 = arith.mulf %15, %21 : vector<32x32xf32>
    %c0_10 = arith.constant 0 : index
    %c0_11 = arith.constant 0 : index
    %23 = vector.load %arg3[%c0_10, %c0_11] : memref<1x32xf32, #tpu.memory_space<vmem>>, vector<1x32xf32>
    %24 = vector.broadcast %23 : vector<1x32xf32> to vector<32x32xf32>
    %25 = arith.addf %22, %24 : vector<32x32xf32>
    %cst_12 = arith.constant 0.000000e+00 : f32
    %26 = vector.broadcast %cst_12 : f32 to vector<32x32xf32>
    %27 = arith.maximumf %25, %26 : vector<32x32xf32>
    %c0_13 = arith.constant 0 : index
    %c0_14 = arith.constant 0 : index
    %28 = vector.load %arg4[%c0_13, %c0_14] : memref<32x32xf32, #tpu.memory_space<vmem>>, vector<32x32xf32>
    tpu.vector_store %arg4[%c0_13, %c0_14], %27 {strides = array<i32>} : memref<32x32xf32, #tpu.memory_space<vmem>>, vector<32x32xf32>,
    return
  }
}

module attributes {stable_mosaic.version = 11 : i64} {
  func.func @_conv_bn_relu_kernel(%arg0: memref<8x512xf32, #tpu.memory_space<vmem>>, %arg1: memref<512x16xf32, #tpu.memory_space<vmem>>, %arg2: memref<1x16xf32, #tpu.memory_space<vmem>>, %arg3: memref<1x16xf32, #tpu.memory_space<vmem>>, %arg4: memref<8x16xf32, #tpu.memory_space<vmem>>) attributes {dimension_semantics = [], scalar_prefetch = 0 : i64, scratch_operands = 0 : i64, tpu.core_type = #tpu.core_type<tc>} {
    %c0 = arith.constant 0 : index
    %c0_0 = arith.constant 0 : index
    %0 = vector.load %arg0[%c0, %c0_0] : memref<8x512xf32, #tpu.memory_space<vmem>>, vector<8x512xf32>
    %c0_1 = arith.constant 0 : index
    %c0_2 = arith.constant 0 : index
    %1 = vector.load %arg1[%c0_1, %c0_2] : memref<512x16xf32, #tpu.memory_space<vmem>>, vector<512x16xf32>
    %cst = arith.constant dense<0.000000e+00> : vector<8x16xf32>
    %2 = tpu.matmul %0, %1, %cst {dimension_numbers = #tpu.dot_dimension_numbers<[1], [0], [0], [1], [0, 0, 1, 1], [], []>} : vector<8x512xf32>, vector<512x16xf32>, vector<8x16xf32> -> vector<8x16xf32>
    %cst_3 = arith.constant dense<0.000000e+00> : vector<16xf32>
    %3 = vector.multi_reduction <add>, %2, %cst_3 [0] : vector<8x16xf32> to vector<16xf32>
    %4 = vector.shape_cast %3 : vector<16xf32> to vector<1x16xf32>
    %cst_4 = arith.constant 8.000000e+00 : f32
    %5 = vector.broadcast %cst_4 : f32 to vector<1x16xf32>
    %6 = arith.divf %4, %5 : vector<1x16xf32>
    %7 = vector.broadcast %6 : vector<1x16xf32> to vector<8x16xf32>
    %8 = arith.subf %2, %7 : vector<8x16xf32>
    %9 = arith.mulf %8, %8 : vector<8x16xf32>
    %cst_5 = arith.constant dense<0.000000e+00> : vector<16xf32>
    %10 = vector.multi_reduction <add>, %9, %cst_5 [0] : vector<8x16xf32> to vector<16xf32>
    %11 = vector.shape_cast %10 : vector<16xf32> to vector<1x16xf32>
    %cst_6 = arith.constant 8.000000e+00 : f32
    %12 = vector.broadcast %cst_6 : f32 to vector<1x16xf32>
    %13 = arith.divf %11, %12 : vector<1x16xf32>
    %14 = vector.broadcast %6 : vector<1x16xf32> to vector<8x16xf32>
    %15 = arith.subf %2, %14 : vector<8x16xf32>
    %c0_7 = arith.constant 0 : index
    %c0_8 = arith.constant 0 : index
    %16 = vector.load %arg2[%c0_7, %c0_8] : memref<1x16xf32, #tpu.memory_space<vmem>>, vector<1x16xf32>
    %cst_9 = arith.constant 9.99999974E-6 : f32
    %17 = vector.broadcast %cst_9 : f32 to vector<1x16xf32>
    %18 = arith.addf %13, %17 : vector<1x16xf32>
    %19 = math.rsqrt %18 : vector<1x16xf32>
    %20 = arith.mulf %16, %19 : vector<1x16xf32>
    %21 = vector.broadcast %20 : vector<1x16xf32> to vector<8x16xf32>
    %22 = arith.mulf %15, %21 : vector<8x16xf32>
    %c0_10 = arith.constant 0 : index
    %c0_11 = arith.constant 0 : index
    %23 = vector.load %arg3[%c0_10, %c0_11] : memref<1x16xf32, #tpu.memory_space<vmem>>, vector<1x16xf32>
    %24 = vector.broadcast %23 : vector<1x16xf32> to vector<8x16xf32>
    %25 = arith.addf %22, %24 : vector<8x16xf32>
    %cst_12 = arith.constant 0.000000e+00 : f32
    %26 = vector.broadcast %cst_12 : f32 to vector<8x16xf32>
    %27 = arith.maximumf %25, %26 : vector<8x16xf32>
    %c0_13 = arith.constant 0 : index
    %c0_14 = arith.constant 0 : index
    %28 = vector.load %arg4[%c0_13, %c0_14] : memref<8x16xf32, #tpu.memory_space<vmem>>, vector<8x16xf32>
    tpu.vector_store %arg4[%c0_13, %c0_14], %27 {strides = array<i32>} : memref<8x16xf32, #tpu.memory_space<vmem>>, vector<8x16xf32>,
    return
  }
}

module attributes {stable_mosaic.version = 11 : i64} {
  func.func @_fc_kernel(%arg0: memref<2x64xf32, #tpu.memory_space<vmem>>, %arg1: memref<8x64xf32, #tpu.memory_space<vmem>>, %arg2: memref<1x8xf32, #tpu.memory_space<vmem>>, %arg3: memref<2x8xf32, #tpu.memory_space<vmem>>) attributes {dimension_semantics = [], scalar_prefetch = 0 : i64, scratch_operands = 0 : i64, tpu.core_type = #tpu.core_type<tc>} {
    %c0 = arith.constant 0 : index
    %c0_0 = arith.constant 0 : index
    %0 = vector.load %arg0[%c0, %c0_0] : memref<2x64xf32, #tpu.memory_space<vmem>>, vector<2x64xf32>
    %c0_1 = arith.constant 0 : index
    %c0_2 = arith.constant 0 : index
    %1 = vector.load %arg1[%c0_1, %c0_2] : memref<8x64xf32, #tpu.memory_space<vmem>>, vector<8x64xf32>
    %cst = arith.constant dense<0.000000e+00> : vector<2x8xf32>
    %2 = tpu.matmul %0, %1, %cst {dimension_numbers = #tpu.dot_dimension_numbers<[1], [1], [0], [0], [0, 0, 1, 0], [], []>} : vector<2x64xf32>, vector<8x64xf32>, vector<2x8xf32> -> vector<2x8xf32>
    %c0_3 = arith.constant 0 : index
    %c0_4 = arith.constant 0 : index
    %3 = vector.load %arg2[%c0_3, %c0_4] : memref<1x8xf32, #tpu.memory_space<vmem>>, vector<1x8xf32>
    %4 = vector.broadcast %3 : vector<1x8xf32> to vector<2x8xf32>
    %5 = arith.addf %2, %4 : vector<2x8xf32>
    %6 = arith.mulf %5, %5 : vector<2x8xf32>
    %cst_5 = arith.constant dense<0.000000e+00> : vector<2xf32>
    %7 = vector.multi_reduction <add>, %6, %cst_5 [1] : vector<2x8xf32> to vector<2xf32>
    %8 = vector.shape_cast %7 : vector<2xf32> to vector<2x1xf32>
    %9 = math.sqrt %8 : vector<2x1xf32>
    %cst_6 = arith.constant 9.99999996E-13 : f32
    %10 = vector.broadcast %cst_6 : f32 to vector<2x1xf32>
    %11 = arith.maximumf %9, %10 : vector<2x1xf32>
    %12 = vector.broadcast %11 : vector<2x1xf32> to vector<2x8xf32>
    %13 = arith.divf %5, %12 : vector<2x8xf32>
    %c0_7 = arith.constant 0 : index
    %c0_8 = arith.constant 0 : index
    %14 = vector.load %arg3[%c0_7, %c0_8] : memref<2x8xf32, #tpu.memory_space<vmem>>, vector<2x8xf32>
    tpu.vector_store %arg3[%c0_7, %c0_8], %13 {strides = array<i32>} : memref<2x8xf32, #tpu.memory_space<vmem>>, vector<2x8xf32>,
    return
  }
}

</mosaic_0001>

<llo_original>
// kernel: conv_encoder_forward.7
$region0: #{conv_encoder_forward.7}
  #allocation0 [shape = 'u32[]', space=smem, size = 0x4, offset = 0x4, fixed_abs, tag = 'smem constant byte address 0x4 - core index']
  #allocation1 [shape = 'u32[144,128]{1,0:T(1,128)}', space=vmem, size = 0x12000, scoped, tag = 'internal scratch']
  %s0 = inlined_call_operand.vmem [shape: f32[512,48], index: 0, kind: input, shape index: {}]
  %s1 = inlined_call_operand.vmem [shape: f32[48,16], index: 1, kind: input, shape index: {}]
  %s2 = inlined_call_operand.vmem [shape: f32[512,16], index: 2, kind: output, shape index: {}]
  %s3 = sld [smem:[#allocation0]]
  $region18: #{conv_encoder_forward.7} parent=0
    _
  %s5 = ssub.s32 1, %s3
  %s6 = scalar_select 0, %s5, %s3
  // Predicated region
  $region2: #{conv_encoder_forward.7} parent=0 // pred_check
    _
  $region3: #{conv_encoder_forward.7} parent=0 // pred_check_branch
    %8 = sbr.rel (0) target = $region5
  $region4: #{conv_encoder_forward.7} parent=0 // pred_region
    _
  $region5: #{conv_encoder_forward.7} parent=0 // pred_fallthru
    _
  // Predicated region
  $region6: #{conv_encoder_forward.7} parent=0 // pred_check
    _
  $region7: #{conv_encoder_forward.7} parent=0 // pred_check_branch
    %10 = sbr.rel (0) target = $region9
  $region8: #{conv_encoder_forward.7} parent=0 // pred_region
    _
  $region9: #{conv_encoder_forward.7} parent=0 // pred_fallthru
    _
  %v11 = vld [vmem:[%s0] sm:$0xff]
  %v12 = vld [vmem:[%s0 + $0x8] sm:$0xff]
  %v13 = vld [vmem:[%s0 + $0x10] sm:$0xff]
  %v14 = vld [vmem:[%s0 + $0x18] sm:$0xff]
  %v15 = vld [vmem:[%s0 + $0x20] sm:$0xff]
  %v16 = vld [vmem:[%s0 + $0x28] sm:$0xff]
  %v17 = vld [vmem:[%s0 + $0x30] sm:$0xff]
  %v18 = vld [vmem:[%s0 + $0x38] sm:$0xff]
  %v19 = vld [vmem:[%s0 + $0x40] sm:$0xff]
  %v20 = vld [vmem:[%s0 + $0x48] sm:$0xff]
  %v21 = vld [vmem:[%s0 + $0x50] sm:$0xff]
  %v22 = vld [vmem:[%s0 + $0x58] sm:$0xff]
  %v23 = vld [vmem:[%s0 + $0x60] sm:$0xff]
  %v24 = vld [vmem:[%s0 + $0x68] sm:$0xff]
  %v25 = vld [vmem:[%s0 + $0x70] sm:$0xff]
  %v26 = vld [vmem:[%s0 + $0x78] sm:$0xff]
  %v27 = vld [vmem:[%s0 + $0x80] sm:$0xff]
  %v28 = vld [vmem:[%s0 + $0x88] sm:$0xff]
  %v29 = vld [vmem:[%s0 + $0x90] sm:$0xff]
  %v30 = vld [vmem:[%s0 + $0x98] sm:$0xff]
  %v31 = vld [vmem:[%s0 + $0xa0] sm:$0xff]
  %v32 = vld [vmem:[%s0 + $0xa8] sm:$0xff]
  %v33 = vld [vmem:[%s0 + $0xb0] sm:$0xff]
  %v34 = vld [vmem:[%s0 + $0xb8] sm:$0xff]
  %v35 = vld [vmem:[%s0 + $0xc0] sm:$0xff]
  %v36 = vld [vmem:[%s0 + $0xc8] sm:$0xff]
  %v37 = vld [vmem:[%s0 + $0xd0] sm:$0xff]
  %v38 = vld [vmem:[%s0 + $0xd8] sm:$0xff]
  %v39 = vld [vmem:[%s0 + $0xe0] sm:$0xff]
  %v40 = vld [vmem:[%s0 + $0xe8] sm:$0xff]
  %v41 = vld [vmem:[%s0 + $0xf0] sm:$0xff]
  %v42 = vld [vmem:[%s0 + $0xf8] sm:$0xff]
  %v43 = vld [vmem:[%s0 + $0x100] sm:$0xff]
  %v44 = vld [vmem:[%s0 + $0x108] sm:$0xff]
  %v45 = vld [vmem:[%s0 + $0x110] sm:$0xff]
  %v46 = vld [vmem:[%s0 + $0x118] sm:$0xff]
  %v47 = vld [vmem:[%s0 + $0x120] sm:$0xff]
  %v48 = vld [vmem:[%s0 + $0x128] sm:$0xff]
  %v49 = vld [vmem:[%s0 + $0x130] sm:$0xff]
  %v50 = vld [vmem:[%s0 + $0x138] sm:$0xff]
  %v51 = vld [vmem:[%s0 + $0x140] sm:$0xff]
  %v52 = vld [vmem:[%s0 + $0x148] sm:$0xff]
  %v53 = vld [vmem:[%s0 + $0x150] sm:$0xff]
  %v54 = vld [vmem:[%s0 + $0x158] sm:$0xff]
  %v55 = vld [vmem:[%s0 + $0x160] sm:$0xff]
  %v56 = vld [vmem:[%s0 + $0x168] sm:$0xff]
  %v57 = vld [vmem:[%s0 + $0x170] sm:$0xff]
  %v58 = vld [vmem:[%s0 + $0x178] sm:$0xff]
  %v59 = vld [vmem:[%s0 + $0x180] sm:$0xff]
  %v60 = vld [vmem:[%s0 + $0x188] sm:$0xff]
  %v61 = vld [vmem:[%s0 + $0x190] sm:$0xff]
  %v62 = vld [vmem:[%s0 + $0x198] sm:$0xff]
  %v63 = vld [vmem:[%s0 + $0x1a0] sm:$0xff]
  %v64 = vld [vmem:[%s0 + $0x1a8] sm:$0xff]
  %v65 = vld [vmem:[%s0 + $0x1b0] sm:$0xff]
  %v66 = vld [vmem:[%s0 + $0x1b8] sm:$0xff]
  %v67 = vld [vmem:[%s0 + $0x1c0] sm:$0xff]
  %v68 = vld [vmem:[%s0 + $0x1c8] sm:$0xff]
  %v69 = vld [vmem:[%s0 + $0x1d0] sm:$0xff]
  %v70 = vld [vmem:[%s0 + $0x1d8] sm:$0xff]
  %v71 = vld [vmem:[%s0 + $0x1e0] sm:$0xff]
  %v72 = vld [vmem:[%s0 + $0x1e8] sm:$0xff]
  %v73 = vld [vmem:[%s0 + $0x1f0] sm:$0xff]
  %v74 = vld [vmem:[%s0 + $0x1f8] sm:$0xff]
  %v75 = vld [vmem:[%s1] sm:$0xff]
  %v76 = vld [vmem:[%s1 + $0x8] sm:$0xff]
  %v77 = vld [vmem:[%s1 + $0x10] sm:$0xff]
  %v78 = vld [vmem:[%s1 + $0x18] sm:$0xff]
  %v79 = vld [vmem:[%s1 + $0x20] sm:$0xff]
  %v80 = vld [vmem:[%s1 + $0x28] sm:$0xff]
  %vm81 = vcmask 392192
  %v83 = vsel %vm81, %v11, 0
  %v86 = vsel %vm81, %v12, 0
  %v89 = vsel %vm81, %v13, 0
  %v92 = vsel %vm81, %v14, 0
  %v95 = vsel %vm81, %v15, 0
  %v98 = vsel %vm81, %v16, 0
  %v101 = vsel %vm81, %v17, 0
  %v104 = vsel %vm81, %v18, 0
  %v107 = vsel %vm81, %v19, 0
  %v110 = vsel %vm81, %v20, 0
  %v113 = vsel %vm81, %v21, 0
  %v116 = vsel %vm81, %v22, 0
  %v119 = vsel %vm81, %v23, 0
  %v122 = vsel %vm81, %v24, 0
  %v125 = vsel %vm81, %v25, 0
  %v128 = vsel %vm81, %v26, 0
  %v131 = vsel %vm81, %v27, 0
  %v134 = vsel %vm81, %v28, 0
  %v137 = vsel %vm81, %v29, 0
  %v140 = vsel %vm81, %v30, 0
  %v143 = vsel %vm81, %v31, 0
  %v146 = vsel %vm81, %v32, 0
  %v149 = vsel %vm81, %v33, 0
  %v152 = vsel %vm81, %v34, 0
  %v155 = vsel %vm81, %v35, 0
  %v158 = vsel %vm81, %v36, 0
  %v161 = vsel %vm81, %v37, 0
  %v164 = vsel %vm81, %v38, 0
  %v167 = vsel %vm81, %v39, 0
  %v170 = vsel %vm81, %v40, 0
  %v173 = vsel %vm81, %v41, 0
  %v176 = vsel %vm81, %v42, 0
  %v179 = vsel %vm81, %v43, 0
  %v182 = vsel %vm81, %v44, 0
  %v185 = vsel %vm81, %v45, 0
  %v188 = vsel %vm81, %v46, 0
  %v191 = vsel %vm81, %v47, 0
  %v194 = vsel %vm81, %v48, 0
  %v197 = vsel %vm81, %v49, 0
  %v200 = vsel %vm81, %v50, 0
  %v203 = vsel %vm81, %v51, 0
  %v206 = vsel %vm81, %v52, 0
  %v209 = vsel %vm81, %v53, 0
  %v212 = vsel %vm81, %v54, 0
  %v215 = vsel %vm81, %v55, 0
  %v218 = vsel %vm81, %v56, 0
  %v221 = vsel %vm81, %v57, 0
  %v224 = vsel %vm81, %v58, 0
  %v227 = vsel %vm81, %v59, 0
  %v230 = vsel %vm81, %v60, 0
  %v233 = vsel %vm81, %v61, 0
  %v236 = vsel %vm81, %v62, 0
  %v239 = vsel %vm81, %v63, 0
  %v242 = vsel %vm81, %v64, 0
  %v245 = vsel %vm81, %v65, 0
  %v248 = vsel %vm81, %v66, 0
  %v251 = vsel %vm81, %v67, 0
  %v254 = vsel %vm81, %v68, 0
  %v257 = vsel %vm81, %v69, 0
  %v260 = vsel %vm81, %v70, 0
  %v263 = vsel %vm81, %v71, 0
  %v266 = vsel %vm81, %v72, 0
  %v269 = vsel %vm81, %v73, 0
  %v272 = vsel %vm81, %v74, 0
  %274 = vmatprep.subr.mxu0 0.0
  %275 = vmatpush1.msra.mxu0 0.0
  %276 = vmatprep.subr.mxu0 0.0
  %277 = vmatpush1.msra.mxu0 0.0
  %278 = vmatprep.subr.mxu0 0.0
  %279 = vmatpush1.msra.mxu0 0.0
  %280 = vmatprep.subr.mxu0 0.0
  %281 = vmatpush1.msra.mxu0 0.0
  %282 = vmatprep.subr.mxu0 0.0
  %283 = vmatpush1.msra.mxu0 0.0
  %284 = vmatprep.subr.mxu0 0.0
  %285 = vmatpush1.msra.mxu0 0.0
  %286 = vmatprep.subr.mxu0 0.0
  %287 = vmatpush1.msra.mxu0 0.0
  %288 = vmatprep.subr.mxu0 0.0
  %289 = vmatpush1.msra.mxu0 0.0
  %290 = vmatprep.subr.mxu0 0.0
  %291 = vmatpush1.msra.mxu0 0.0
  %292 = vmatprep.subr.mxu0 0.0
  %293 = vmatpush1.msra.mxu0 0.0
  %294 = vmatprep.subr.mxu0 0.0
  %295 = vmatpush1.msra.mxu0 %v80
  %296 = vmatprep.subr.mxu0 0.0
  %297 = vmatpush1.msra.mxu0 %v79
  %298 = vmatprep.subr.mxu0 0.0
  %299 = vmatpush1.msra.mxu0 %v78
  %300 = vmatprep.subr.mxu0 0.0
  %301 = vmatpush1.msra.mxu0 %v77
  %302 = vmatprep.subr.mxu0 0.0
  %303 = vmatpush1.msra.mxu0 %v76
  %304 = vmatprep.subr.mxu0 0.0
  %305 = vmatpush1.msra.mxu0 %v75
  %306 = vmatprep.subr.mxu0 0.0
  %307 = vmatpush2.msra.mxu0 0.0
  %308 = vmatprep.subr.mxu0 0.0
  %309 = vmatpush2.msra.mxu0 0.0
  %310 = vmatprep.subr.mxu0 0.0
  %311 = vmatpush2.msra.mxu0 0.0
  %312 = vmatprep.subr.mxu0 0.0
  %313 = vmatpush2.msra.mxu0 0.0
  %314 = vmatprep.subr.mxu0 0.0
  %315 = vmatpush2.msra.mxu0 0.0
  %316 = vmatprep.subr.mxu0 0.0
  %317 = vmatpush2.msra.mxu0 0.0
  %318 = vmatprep.subr.mxu0 0.0
  %319 = vmatpush2.msra.mxu0 0.0
  %320 = vmatprep.subr.mxu0 0.0
  %321 = vmatpush2.msra.mxu0 0.0
  %322 = vmatprep.subr.mxu0 0.0
  %323 = vmatpush2.msra.mxu0 0.0
  %324 = vmatprep.subr.mxu0 0.0
  %325 = vmatpush2.msra.mxu0 0.0
  %326 = vmatprep.subr.mxu0 0.0
  %327 = vmatpush2.msra.mxu0 0.0
  %328 = vmatprep.subr.mxu0 0.0
  %329 = vmatpush2.msra.mxu0 0.0
  %330 = vmatprep.subr.mxu0 0.0
  %331 = vmatpush2.msra.mxu0 0.0
  %332 = vmatprep.subr.mxu0 0.0
  %333 = vmatpush2.msra.mxu0 0.0
  %334 = vmatprep.subr.mxu0 0.0
  %335 = vmatpush2.msra.mxu0 0.0
  %336 = vmatprep.subr.mxu0 0.0
  %337 = vmatpush2.msra.mxu0 0.0
  %338 = vmatprep.mubr.f32.mxu0 0.0
  %339 = vmatmul.mubr.f32.gmra.mxu0 %v83
  %v340 = vpop.f32.mrf.mxu0
  %v341 = vadd.f32 0.0, %v340
  %v342 = vpop.f32.mrf.mxu0
  %343 = vmatprep.mubr.f32.mxu0 0.0
  %344 = vmatmul.mubr.f32.gmra.mxu0 %v86
  %v345 = vpop.f32.mrf.mxu0
  %v346 = vadd.f32 0.0, %v345
  %v347 = vpop.f32.mrf.mxu0
  %348 = vmatprep.mubr.f32.mxu0 0.0
  %349 = vmatmul.mubr.f32.gmra.mxu0 %v89
  %v350 = vpop.f32.mrf.mxu0
  %v351 = vadd.f32 0.0, %v350
  %v352 = vpop.f32.mrf.mxu0
  %353 = vmatprep.mubr.f32.mxu0 0.0
  %354 = vmatmul.mubr.f32.gmra.mxu0 %v92
  %v355 = vpop.f32.mrf.mxu0
  %v356 = vadd.f32 0.0, %v355
  %v357 = vpop.f32.mrf.mxu0
  %358 = vmatprep.mubr.f32.mxu0 0.0
  %359 = vmatmul.mubr.f32.gmra.mxu0 %v95
  %v360 = vpop.f32.mrf.mxu0
  %v361 = vadd.f32 0.0, %v360
  %v362 = vpop.f32.mrf.mxu0
  %363 = vmatprep.mubr.f32.mxu0 0.0
  %364 = vmatmul.mubr.f32.gmra.mxu0 %v98
  %v365 = vpop.f32.mrf.mxu0
  %v366 = vadd.f32 0.0, %v365
  %v367 = vpop.f32.mrf.mxu0
  %368 = vmatprep.mubr.f32.mxu0 0.0
  %369 = vmatmul.mubr.f32.gmra.mxu0 %v101
  %v370 = vpop.f32.mrf.mxu0
  %v371 = vadd.f32 0.0, %v370
  %v372 = vpop.f32.mrf.mxu0
  %373 = vmatprep.mubr.f32.mxu0 0.0
  %374 = vmatmul.mubr.f32.gmra.mxu0 %v104
  %v375 = vpop.f32.mrf.mxu0
  %v376 = vadd.f32 0.0, %v375
  %v377 = vpop.f32.mrf.mxu0
  %378 = vmatprep.mubr.f32.mxu0 0.0
  %379 = vmatmul.mubr.f32.gmra.mxu0 %v107
  %v380 = vpop.f32.mrf.mxu0
  %v381 = vadd.f32 0.0, %v380
  %v382 = vpop.f32.mrf.mxu0
  %383 = vmatprep.mubr.f32.mxu0 0.0
  %384 = vmatmul.mubr.f32.gmra.mxu0 %v110
  %v385 = vpop.f32.mrf.mxu0
  %v386 = vadd.f32 0.0, %v385
  %v387 = vpop.f32.mrf.mxu0
  %388 = vmatprep.mubr.f32.mxu0 0.0
  %389 = vmatmul.mubr.f32.gmra.mxu0 %v113
  %v390 = vpop.f32.mrf.mxu0
  %v391 = vadd.f32 0.0, %v390
  %v392 = vpop.f32.mrf.mxu0
  %393 = vmatprep.mubr.f32.mxu0 0.0
  %394 = vmatmul.mubr.f32.gmra.mxu0 %v116
  %v395 = vpop.f32.mrf.mxu0
  %v396 = vadd.f32 0.0, %v395
  %v397 = vpop.f32.mrf.mxu0
  %398 = vmatprep.mubr.f32.mxu0 0.0
  %399 = vmatmul.mubr.f32.gmra.mxu0 %v119
  %v400 = vpop.f32.mrf.mxu0
  %v401 = vadd.f32 0.0, %v400
  %v402 = vpop.f32.mrf.mxu0
  %403 = vmatprep.mubr.f32.mxu0 0.0
  %404 = vmatmul.mubr.f32.gmra.mxu0 %v122
  %v405 = vpop.f32.mrf.mxu0
  %v406 = vadd.f32 0.0, %v405
  %v407 = vpop.f32.mrf.mxu0
  %408 = vmatprep.mubr.f32.mxu0 0.0
  %409 = vmatmul.mubr.f32.gmra.mxu0 %v125
  %v410 = vpop.f32.mrf.mxu0
  %v411 = vadd.f32 0.0, %v410
  %v412 = vpop.f32.mrf.mxu0
  %413 = vmatprep.mubr.f32.mxu0 0.0
  %414 = vmatmul.mubr.f32.gmra.mxu0 %v128
  %v415 = vpop.f32.mrf.mxu0
  %v416 = vadd.f32 0.0, %v415
  %v417 = vpop.f32.mrf.mxu0
  %418 = vmatprep.mubr.f32.mxu0 0.0
  %419 = vmatmul.mubr.f32.gmra.mxu0 %v131
  %v420 = vpop.f32.mrf.mxu0
  %v421 = vadd.f32 0.0, %v420
  %v422 = vpop.f32.mrf.mxu0
  %423 = vmatprep.mubr.f32.mxu0 0.0
  %424 = vmatmul.mubr.f32.gmra.mxu0 %v134
  %v425 = vpop.f32.mrf.mxu0
  %v426 = vadd.f32 0.0, %v425
  %v427 = vpop.f32.mrf.mxu0
  %428 = vmatprep.mubr.f32.mxu0 0.0
  %429 = vmatmul.mubr.f32.gmra.mxu0 %v137
  %v430 = vpop.f32.mrf.mxu0
  %v431 = vadd.f32 0.0, %v430
  %v432 = vpop.f32.mrf.mxu0
  %433 = vmatprep.mubr.f32.mxu0 0.0
  %434 = vmatmul.mubr.f32.gmra.mxu0 %v140
  %v435 = vpop.f32.mrf.mxu0
  %v436 = vadd.f32 0.0, %v435
  %v437 = vpop.f32.mrf.mxu0
  %438 = vmatprep.mubr.f32.mxu0 0.0
  %439 = vmatmul.mubr.f32.gmra.mxu0 %v143
  %v440 = vpop.f32.mrf.mxu0
  %v441 = vadd.f32 0.0, %v440
  %v442 = vpop.f32.mrf.mxu0
  %443 = vmatprep.mubr.f32.mxu0 0.0
  %444 = vmatmul.mubr.f32.gmra.mxu0 %v146
  %v445 = vpop.f32.mrf.mxu0
  %v446 = vadd.f32 0.0, %v445
  %v447 = vpop.f32.mrf.mxu0
  %448 = vmatprep.mubr.f32.mxu0 0.0
  %449 = vmatmul.mubr.f32.gmra.mxu0 %v149
  %v450 = vpop.f32.mrf.mxu0
  %v451 = vadd.f32 0.0, %v450
  %v452 = vpop.f32.mrf.mxu0
  %453 = vmatprep.mubr.f32.mxu0 0.0
  %454 = vmatmul.mubr.f32.gmra.mxu0 %v152
  %v455 = vpop.f32.mrf.mxu0
  %v456 = vadd.f32 0.0, %v455
  %v457 = vpop.f32.mrf.mxu0
  %458 = vmatprep.mubr.f32.mxu0 0.0
  %459 = vmatmul.mubr.f32.gmra.mxu0 %v155
  %v460 = vpop.f32.mrf.mxu0
  %v461 = vadd.f32 0.0, %v460
  %v462 = vpop.f32.mrf.mxu0
  %463 = vmatprep.mubr.f32.mxu0 0.0
  %464 = vmatmul.mubr.f32.gmra.mxu0 %v158
  %v465 = vpop.f32.mrf.mxu0
  %v466 = vadd.f32 0.0, %v465
  %v467 = vpop.f32.mrf.mxu0
  %468 = vmatprep.mubr.f32.mxu0 0.0
  %469 = vmatmul.mubr.f32.gmra.mxu0 %v161
  %v470 = vpop.f32.mrf.mxu0
  %v471 = vadd.f32 0.0, %v470
  %v472 = vpop.f32.mrf.mxu0
  %473 = vmatprep.mubr.f32.mxu0 0.0
  %474 = vmatmul.mubr.f32.gmra.mxu0 %v164
  %v475 = vpop.f32.mrf.mxu0
  %v476 = vadd.f32 0.0, %v475
  %v477 = vpop.f32.mrf.mxu0
  %478 = vmatprep.mubr.f32.mxu0 0.0
  %479 = vmatmul.mubr.f32.gmra.mxu0 %v167
  %v480 = vpop.f32.mrf.mxu0
  %v481 = vadd.f32 0.0, %v480
  %v482 = vpop.f32.mrf.mxu0
  %483 = vmatprep.mubr.f32.mxu0 0.0
  %484 = vmatmul.mubr.f32.gmra.mxu0 %v170
  %v485 = vpop.f32.mrf.mxu0
  %v486 = vadd.f32 0.0, %v485
  %v487 = vpop.f32.mrf.mxu0
  %488 = vmatprep.mubr.f32.mxu0 0.0
  %489 = vmatmul.mubr.f32.gmra.mxu0 %v173
  %v490 = vpop.f32.mrf.mxu0
  %v491 = vadd.f32 0.0, %v490
  %v492 = vpop.f32.mrf.mxu0
  %493 = vmatprep.mubr.f32.mxu0 0.0
  %494 = vmatmul.mubr.f32.gmra.mxu0 %v176
  %v495 = vpop.f32.mrf.mxu0
  %v496 = vadd.f32 0.0, %v495
  %v497 = vpop.f32.mrf.mxu0
  %498 = vmatprep.mubr.f32.mxu0 0.0
  %499 = vmatmul.mubr.f32.gmra.mxu0 %v179
  %v500 = vpop.f32.mrf.mxu0
  %v501 = vadd.f32 0.0, %v500
  %v502 = vpop.f32.mrf.mxu0
  %503 = vmatprep.mubr.f32.mxu0 0.0
  %504 = vmatmul.mubr.f32.gmra.mxu0 %v182
  %v505 = vpop.f32.mrf.mxu0
  %v506 = vadd.f32 0.0, %v505
  %v507 = vpop.f32.mrf.mxu0
  %508 = vmatprep.mubr.f32.mxu0 0.0
  %509 = vmatmul.mubr.f32.gmra.mxu0 %v185
  %v510 = vpop.f32.mrf.mxu0
  %v511 = vadd.f32 0.0, %v510
  %v512 = vpop.f32.mrf.mxu0
  %513 = vmatprep.mubr.f32.mxu0 0.0
  %514 = vmatmul.mubr.f32.gmra.mxu0 %v188
  %v515 = vpop.f32.mrf.mxu0
  %v516 = vadd.f32 0.0, %v515
  %v517 = vpop.f32.mrf.mxu0
  %518 = vmatprep.mubr.f32.mxu0 0.0
  %519 = vmatmul.mubr.f32.gmra.mxu0 %v191
  %v520 = vpop.f32.mrf.mxu0
  %v521 = vadd.f32 0.0, %v520
  %v522 = vpop.f32.mrf.mxu0
  %523 = vmatprep.mubr.f32.mxu0 0.0
  %524 = vmatmul.mubr.f32.gmra.mxu0 %v194
  %v525 = vpop.f32.mrf.mxu0
  %v526 = vadd.f32 0.0, %v525
  %v527 = vpop.f32.mrf.mxu0
  %528 = vmatprep.mubr.f32.mxu0 0.0
  %529 = vmatmul.mubr.f32.gmra.mxu0 %v197
  %v530 = vpop.f32.mrf.mxu0
  %v531 = vadd.f32 0.0, %v530
  %v532 = vpop.f32.mrf.mxu0
  %533 = vmatprep.mubr.f32.mxu0 0.0
  %534 = vmatmul.mubr.f32.gmra.mxu0 %v200
  %v535 = vpop.f32.mrf.mxu0
  %v536 = vadd.f32 0.0, %v535
  %v537 = vpop.f32.mrf.mxu0
  %538 = vmatprep.mubr.f32.mxu0 0.0
  %539 = vmatmul.mubr.f32.gmra.mxu0 %v203
  %v540 = vpop.f32.mrf.mxu0
  %v541 = vadd.f32 0.0, %v540
  %v542 = vpop.f32.mrf.mxu0
  %543 = vmatprep.mubr.f32.mxu0 0.0
  %544 = vmatmul.mubr.f32.gmra.mxu0 %v206
  %v545 = vpop.f32.mrf.mxu0
  %v546 = vadd.f32 0.0, %v545
  %v547 = vpop.f32.mrf.mxu0
  %548 = vmatprep.mubr.f32.mxu0 0.0
  %549 = vmatmul.mubr.f32.gmra.mxu0 %v209
  %v550 = vpop.f32.mrf.mxu0
  %v551 = vadd.f32 0.0, %v550
  %v552 = vpop.f32.mrf.mxu0
  %553 = vmatprep.mubr.f32.mxu0 0.0
  %554 = vmatmul.mubr.f32.gmra.mxu0 %v212
  %v555 = vpop.f32.mrf.mxu0
  %v556 = vadd.f32 0.0, %v555
  %v557 = vpop.f32.mrf.mxu0
  %558 = vmatprep.mubr.f32.mxu0 0.0
  %559 = vmatmul.mubr.f32.gmra.mxu0 %v215
  %v560 = vpop.f32.mrf.mxu0
  %v561 = vadd.f32 0.0, %v560
  %v562 = vpop.f32.mrf.mxu0
  %563 = vmatprep.mubr.f32.mxu0 0.0
  %564 = vmatmul.mubr.f32.gmra.mxu0 %v218
  %v565 = vpop.f32.mrf.mxu0
  %v566 = vadd.f32 0.0, %v565
  %v567 = vpop.f32.mrf.mxu0
  %568 = vmatprep.mubr.f32.mxu0 0.0
  %569 = vmatmul.mubr.f32.gmra.mxu0 %v221
  %v570 = vpop.f32.mrf.mxu0
  %v571 = vadd.f32 0.0, %v570
  %v572 = vpop.f32.mrf.mxu0
  %573 = vmatprep.mubr.f32.mxu0 0.0
  %574 = vmatmul.mubr.f32.gmra.mxu0 %v224
  %v575 = vpop.f32.mrf.mxu0
  %v576 = vadd.f32 0.0, %v575
  %v577 = vpop.f32.mrf.mxu0
  %578 = vmatprep.mubr.f32.mxu0 0.0
  %579 = vmatmul.mubr.f32.gmra.mxu0 %v227
  %v580 = vpop.f32.mrf.mxu0
  %v581 = vadd.f32 0.0, %v580
  %v582 = vpop.f32.mrf.mxu0
  %583 = vmatprep.mubr.f32.mxu0 0.0
  %584 = vmatmul.mubr.f32.gmra.mxu0 %v230
  %v585 = vpop.f32.mrf.mxu0
  %v586 = vadd.f32 0.0, %v585
  %v587 = vpop.f32.mrf.mxu0
  %588 = vmatprep.mubr.f32.mxu0 0.0
  %589 = vmatmul.mubr.f32.gmra.mxu0 %v233
  %v590 = vpop.f32.mrf.mxu0
  %v591 = vadd.f32 0.0, %v590
  %v592 = vpop.f32.mrf.mxu0
  %593 = vmatprep.mubr.f32.mxu0 0.0
  %594 = vmatmul.mubr.f32.gmra.mxu0 %v236
  %v595 = vpop.f32.mrf.mxu0
  %v596 = vadd.f32 0.0, %v595
  %v597 = vpop.f32.mrf.mxu0
  %598 = vmatprep.mubr.f32.mxu0 0.0
  %599 = vmatmul.mubr.f32.gmra.mxu0 %v239
  %v600 = vpop.f32.mrf.mxu0
  %v601 = vadd.f32 0.0, %v600
  %v602 = vpop.f32.mrf.mxu0
  %603 = vmatprep.mubr.f32.mxu0 0.0
  %604 = vmatmul.mubr.f32.gmra.mxu0 %v242
  %v605 = vpop.f32.mrf.mxu0
  %v606 = vadd.f32 0.0, %v605
  %v607 = vpop.f32.mrf.mxu0
  %608 = vmatprep.mubr.f32.mxu0 0.0
  %609 = vmatmul.mubr.f32.gmra.mxu0 %v245
  %v610 = vpop.f32.mrf.mxu0
  %v611 = vadd.f32 0.0, %v610
  %v612 = vpop.f32.mrf.mxu0
  %613 = vmatprep.mubr.f32.mxu0 0.0
  %614 = vmatmul.mubr.f32.gmra.mxu0 %v248
  %v615 = vpop.f32.mrf.mxu0
  %v616 = vadd.f32 0.0, %v615
  %v617 = vpop.f32.mrf.mxu0
  %618 = vmatprep.mubr.f32.mxu0 0.0
  %619 = vmatmul.mubr.f32.gmra.mxu0 %v251
  %v620 = vpop.f32.mrf.mxu0
  %v621 = vadd.f32 0.0, %v620
  %v622 = vpop.f32.mrf.mxu0
  %623 = vmatprep.mubr.f32.mxu0 0.0
  %624 = vmatmul.mubr.f32.gmra.mxu0 %v254
  %v625 = vpop.f32.mrf.mxu0
  %v626 = vadd.f32 0.0, %v625
  %v627 = vpop.f32.mrf.mxu0
  %628 = vmatprep.mubr.f32.mxu0 0.0
  %629 = vmatmul.mubr.f32.gmra.mxu0 %v257
  %v630 = vpop.f32.mrf.mxu0
  %v631 = vadd.f32 0.0, %v630
  %v632 = vpop.f32.mrf.mxu0
  %633 = vmatprep.mubr.f32.mxu0 0.0
  %634 = vmatmul.mubr.f32.gmra.mxu0 %v260
  %v635 = vpop.f32.mrf.mxu0
  %v636 = vadd.f32 0.0, %v635
  %v637 = vpop.f32.mrf.mxu0
  %638 = vmatprep.mubr.f32.mxu0 0.0
  %639 = vmatmul.mubr.f32.gmra.mxu0 %v263
  %v640 = vpop.f32.mrf.mxu0
  %v641 = vadd.f32 0.0, %v640
  %v642 = vpop.f32.mrf.mxu0
  %643 = vmatprep.mubr.f32.mxu0 0.0
  %644 = vmatmul.mubr.f32.gmra.mxu0 %v266
  %v645 = vpop.f32.mrf.mxu0
  %v646 = vadd.f32 0.0, %v645
  %v647 = vpop.f32.mrf.mxu0
  %648 = vmatprep.mubr.f32.mxu0 0.0
  %649 = vmatmul.mubr.f32.gmra.mxu0 %v269
  %v650 = vpop.f32.mrf.mxu0
  %v651 = vadd.f32 0.0, %v650
  %v652 = vpop.f32.mrf.mxu0
  %653 = vmatprep.mubr.f32.mxu0 0.0
  %654 = vmatmul.mubr.f32.gmra.mxu0 %v272
  %v655 = vpop.f32.mrf.mxu0
  %v656 = vadd.f32 0.0, %v655
  %v657 = vpop.f32.mrf.mxu0
  %658 = vdwg.mxu0
  %v659 = vmax.f32 %v341, 0.0
  %v660 = vmax.f32 %v346, 0.0
  %v661 = vmax.f32 %v351, 0.0
  %v662 = vmax.f32 %v356, 0.0
  %v663 = vmax.f32 %v361, 0.0
  %v664 = vmax.f32 %v366, 0.0
  %v665 = vmax.f32 %v371, 0.0
  %v666 = vmax.f32 %v376, 0.0
  %v667 = vmax.f32 %v381, 0.0
  %v668 = vmax.f32 %v386, 0.0
  %v669 = vmax.f32 %v391, 0.0
  %v670 = vmax.f32 %v396, 0.0
  %v671 = vmax.f32 %v401, 0.0
  %v672 = vmax.f32 %v406, 0.0
  %v673 = vmax.f32 %v411, 0.0
  %v674 = vmax.f32 %v416, 0.0
  %v675 = vmax.f32 %v421, 0.0
  %v676 = vmax.f32 %v426, 0.0
  %v677 = vmax.f32 %v431, 0.0
  %v678 = vmax.f32 %v436, 0.0
  %v679 = vmax.f32 %v441, 0.0
  %v680 = vmax.f32 %v446, 0.0
  %v681 = vmax.f32 %v451, 0.0
  %v682 = vmax.f32 %v456, 0.0
  %v683 = vmax.f32 %v461, 0.0
  %v684 = vmax.f32 %v466, 0.0
  %v685 = vmax.f32 %v471, 0.0
  %v686 = vmax.f32 %v476, 0.0
  %v687 = vmax.f32 %v481, 0.0
  %v688 = vmax.f32 %v486, 0.0
  %v689 = vmax.f32 %v491, 0.0
  %v690 = vmax.f32 %v496, 0.0
  %v691 = vmax.f32 %v501, 0.0
  %v692 = vmax.f32 %v506, 0.0
  %v693 = vmax.f32 %v511, 0.0
  %v694 = vmax.f32 %v516, 0.0
  %v695 = vmax.f32 %v521, 0.0
  %v696 = vmax.f32 %v526, 0.0
  %v697 = vmax.f32 %v531, 0.0
  %v698 = vmax.f32 %v536, 0.0
  %v699 = vmax.f32 %v541, 0.0
  %v700 = vmax.f32 %v546, 0.0
  %v701 = vmax.f32 %v551, 0.0
  %v702 = vmax.f32 %v556, 0.0
  %v703 = vmax.f32 %v561, 0.0
  %v704 = vmax.f32 %v566, 0.0
  %v705 = vmax.f32 %v571, 0.0
  %v706 = vmax.f32 %v576, 0.0
  %v707 = vmax.f32 %v581, 0.0
  %v708 = vmax.f32 %v586, 0.0
  %v709 = vmax.f32 %v591, 0.0
  %v710 = vmax.f32 %v596, 0.0
  %v711 = vmax.f32 %v601, 0.0
  %v712 = vmax.f32 %v606, 0.0
  %v713 = vmax.f32 %v611, 0.0
  %v714 = vmax.f32 %v616, 0.0
  %v715 = vmax.f32 %v621, 0.0
  %v716 = vmax.f32 %v626, 0.0
  %v717 = vmax.f32 %v631, 0.0
  %v718 = vmax.f32 %v636, 0.0
  %v719 = vmax.f32 %v641, 0.0
  %v720 = vmax.f32 %v646, 0.0
  %v721 = vmax.f32 %v651, 0.0
  %v722 = vmax.f32 %v656, 0.0
  %vm723 = vcmask 130048
  %724 = vst.msk [vmem:[%s2] sm:$0xff] %vm723, %v659
  %725 = vst.msk [vmem:[%s2 + $0x8] sm:$0xff] %vm723, %v660
  %726 = vst.msk [vmem:[%s2 + $0x10] sm:$0xff] %vm723, %v661
  %727 = vst.msk [vmem:[%s2 + $0x18] sm:$0xff] %vm723, %v662
  %728 = vst.msk [vmem:[%s2 + $0x20] sm:$0xff] %vm723, %v663
  %729 = vst.msk [vmem:[%s2 + $0x28] sm:$0xff] %vm723, %v664
  %730 = vst.msk [vmem:[%s2 + $0x30] sm:$0xff] %vm723, %v665
  %731 = vst.msk [vmem:[%s2 + $0x38] sm:$0xff] %vm723, %v666
  %732 = vst.msk [vmem:[%s2 + $0x40] sm:$0xff] %vm723, %v667
  %733 = vst.msk [vmem:[%s2 + $0x48] sm:$0xff] %vm723, %v668
  %734 = vst.msk [vmem:[%s2 + $0x50] sm:$0xff] %vm723, %v669
  %735 = vst.msk [vmem:[%s2 + $0x58] sm:$0xff] %vm723, %v670
  %736 = vst.msk [vmem:[%s2 + $0x60] sm:$0xff] %vm723, %v671
  %737 = vst.msk [vmem:[%s2 + $0x68] sm:$0xff] %vm723, %v672
  %738 = vst.msk [vmem:[%s2 + $0x70] sm:$0xff] %vm723, %v673
  %739 = vst.msk [vmem:[%s2 + $0x78] sm:$0xff] %vm723, %v674
  %740 = vst.msk [vmem:[%s2 + $0x80] sm:$0xff] %vm723, %v675
  %741 = vst.msk [vmem:[%s2 + $0x88] sm:$0xff] %vm723, %v676
  %742 = vst.msk [vmem:[%s2 + $0x90] sm:$0xff] %vm723, %v677
  %743 = vst.msk [vmem:[%s2 + $0x98] sm:$0xff] %vm723, %v678
  %744 = vst.msk [vmem:[%s2 + $0xa0] sm:$0xff] %vm723, %v679
  %745 = vst.msk [vmem:[%s2 + $0xa8] sm:$0xff] %vm723, %v680
  %746 = vst.msk [vmem:[%s2 + $0xb0] sm:$0xff] %vm723, %v681
  %747 = vst.msk [vmem:[%s2 + $0xb8] sm:$0xff] %vm723, %v682
  %748 = vst.msk [vmem:[%s2 + $0xc0] sm:$0xff] %vm723, %v683
  %749 = vst.msk [vmem:[%s2 + $0xc8] sm:$0xff] %vm723, %v684
  %750 = vst.msk [vmem:[%s2 + $0xd0] sm:$0xff] %vm723, %v685
  %751 = vst.msk [vmem:[%s2 + $0xd8] sm:$0xff] %vm723, %v686
  %752 = vst.msk [vmem:[%s2 + $0xe0] sm:$0xff] %vm723, %v687
  %753 = vst.msk [vmem:[%s2 + $0xe8] sm:$0xff] %vm723, %v688
  %754 = vst.msk [vmem:[%s2 + $0xf0] sm:$0xff] %vm723, %v689
  %755 = vst.msk [vmem:[%s2 + $0xf8] sm:$0xff] %vm723, %v690
  %756 = vst.msk [vmem:[%s2 + $0x100] sm:$0xff] %vm723, %v691
  %757 = vst.msk [vmem:[%s2 + $0x108] sm:$0xff] %vm723, %v692
  %758 = vst.msk [vmem:[%s2 + $0x110] sm:$0xff] %vm723, %v693
  %759 = vst.msk [vmem:[%s2 + $0x118] sm:$0xff] %vm723, %v694
  %760 = vst.msk [vmem:[%s2 + $0x120] sm:$0xff] %vm723, %v695
  %761 = vst.msk [vmem:[%s2 + $0x128] sm:$0xff] %vm723, %v696
  %762 = vst.msk [vmem:[%s2 + $0x130] sm:$0xff] %vm723, %v697
  %763 = vst.msk [vmem:[%s2 + $0x138] sm:$0xff] %vm723, %v698
  %764 = vst.msk [vmem:[%s2 + $0x140] sm:$0xff] %vm723, %v699
  %765 = vst.msk [vmem:[%s2 + $0x148] sm:$0xff] %vm723, %v700
  %766 = vst.msk [vmem:[%s2 + $0x150] sm:$0xff] %vm723, %v701
  %767 = vst.msk [vmem:[%s2 + $0x158] sm:$0xff] %vm723, %v702
  %768 = vst.msk [vmem:[%s2 + $0x160] sm:$0xff] %vm723, %v703
  %769 = vst.msk [vmem:[%s2 + $0x168] sm:$0xff] %vm723, %v704
  %770 = vst.msk [vmem:[%s2 + $0x170] sm:$0xff] %vm723, %v705
  %771 = vst.msk [vmem:[%s2 + $0x178] sm:$0xff] %vm723, %v706
  %772 = vst.msk [vmem:[%s2 + $0x180] sm:$0xff] %vm723, %v707
  %773 = vst.msk [vmem:[%s2 + $0x188] sm:$0xff] %vm723, %v708
  %774 = vst.msk [vmem:[%s2 + $0x190] sm:$0xff] %vm723, %v709
  %775 = vst.msk [vmem:[%s2 + $0x198] sm:$0xff] %vm723, %v710
  %776 = vst.msk [vmem:[%s2 + $0x1a0] sm:$0xff] %vm723, %v711
  %777 = vst.msk [vmem:[%s2 + $0x1a8] sm:$0xff] %vm723, %v712
  %778 = vst.msk [vmem:[%s2 + $0x1b0] sm:$0xff] %vm723, %v713
  %779 = vst.msk [vmem:[%s2 + $0x1b8] sm:$0xff] %vm723, %v714
  %780 = vst.msk [vmem:[%s2 + $0x1c0] sm:$0xff] %vm723, %v715
  %781 = vst.msk [vmem:[%s2 + $0x1c8] sm:$0xff] %vm723, %v716
  %782 = vst.msk [vmem:[%s2 + $0x1d0] sm:$0xff] %vm723, %v717
  %783 = vst.msk [vmem:[%s2 + $0x1d8] sm:$0xff] %vm723, %v718
  %784 = vst.msk [vmem:[%s2 + $0x1e0] sm:$0xff] %vm723, %v719
  %785 = vst.msk [vmem:[%s2 + $0x1e8] sm:$0xff] %vm723, %v720
  %786 = vst.msk [vmem:[%s2 + $0x1f0] sm:$0xff] %vm723, %v721
  %787 = vst.msk [vmem:[%s2 + $0x1f8] sm:$0xff] %vm723, %v722
  // Predicated region
  $region10: #{conv_encoder_forward.7} parent=0 // pred_check
    _
  $region11: #{conv_encoder_forward.7} parent=0 // pred_check_branch
    %789 = sbr.rel (0) target = $region13
  $region12: #{conv_encoder_forward.7} parent=0 // pred_region
    _
  $region13: #{conv_encoder_forward.7} parent=0 // pred_fallthru
    _
  // Predicated region
  $region14: #{conv_encoder_forward.7} parent=0 // pred_check
    _
  $region15: #{conv_encoder_forward.7} parent=0 // pred_check_branch
    %791 = sbr.rel (0) target = $region17
  $region16: #{conv_encoder_forward.7} parent=0 // pred_region
    _
  $region17: #{conv_encoder_forward.7} parent=0 // pred_fallthru
    _

// kernel: conv_encoder_forward.8
$region0: #{conv_encoder_forward.8}
  #allocation0 [shape = 'u32[]', space=smem, size = 0x4, offset = 0x4, fixed_abs, tag = 'smem constant byte address 0x4 - core index']
  #allocation1 [shape = 'u32[144,128]{1,0:T(1,128)}', space=vmem, size = 0x12000, scoped, tag = 'internal scratch']
  %s0 = inlined_call_operand.vmem [shape: f32[128,256], index: 0, kind: input, shape index: {}]
  %s1 = inlined_call_operand.vmem [shape: f32[256,32], index: 1, kind: input, shape index: {}]
  %s2 = inlined_call_operand.vmem [shape: f32[1,32], index: 2, kind: input, shape index: {}]
  %s3 = inlined_call_operand.vmem [shape: f32[1,32], index: 3, kind: input, shape index: {}]
  %s4 = inlined_call_operand.vmem [shape: f32[128,32], index: 4, kind: output, shape index: {}]
  %s5 = sld [smem:[#allocation0]]
  $region26: #{conv_encoder_forward.8} parent=0
    _
  %s7 = ssub.s32 1, %s5
  %s8 = scalar_select 0, %s7, %s5
  // Predicated region
  $region2: #{conv_encoder_forward.8} parent=0 // pred_check
    _
  $region3: #{conv_encoder_forward.8} parent=0 // pred_check_branch
    %10 = sbr.rel (0) target = $region5
  $region4: #{conv_encoder_forward.8} parent=0 // pred_region
    _
  $region5: #{conv_encoder_forward.8} parent=0 // pred_fallthru
    _
  // Predicated region
  $region6: #{conv_encoder_forward.8} parent=0 // pred_check
    _
  $region7: #{conv_encoder_forward.8} parent=0 // pred_check_branch
    %12 = sbr.rel (0) target = $region9
  $region8: #{conv_encoder_forward.8} parent=0 // pred_region
    _
  $region9: #{conv_encoder_forward.8} parent=0 // pred_fallthru
    _
  // Predicated region
  $region10: #{conv_encoder_forward.8} parent=0 // pred_check
    _
  $region11: #{conv_encoder_forward.8} parent=0 // pred_check_branch
    %14 = sbr.rel (0) target = $region13
  $region12: #{conv_encoder_forward.8} parent=0 // pred_region
    _
  $region13: #{conv_encoder_forward.8} parent=0 // pred_fallthru
    _
  // Predicated region
  $region14: #{conv_encoder_forward.8} parent=0 // pred_check
    _
  $region15: #{conv_encoder_forward.8} parent=0 // pred_check_branch
    %16 = sbr.rel (0) target = $region17
  $region16: #{conv_encoder_forward.8} parent=0 // pred_region
    _
  $region17: #{conv_encoder_forward.8} parent=0 // pred_fallthru
    _
  %v17 = vld [vmem:[%s0] sm:$0xff]
  %v18 = vld [vmem:[%s0 + $0x8] sm:$0xff]
  %v19 = vld [vmem:[%s0 + $0x10] sm:$0xff]
  %v20 = vld [vmem:[%s0 + $0x18] sm:$0xff]
  %v21 = vld [vmem:[%s0 + $0x20] sm:$0xff]
  %v22 = vld [vmem:[%s0 + $0x28] sm:$0xff]
  %v23 = vld [vmem:[%s0 + $0x30] sm:$0xff]
  %v24 = vld [vmem:[%s0 + $0x38] sm:$0xff]
  %v25 = vld [vmem:[%s0 + $0x40] sm:$0xff]
  %v26 = vld [vmem:[%s0 + $0x48] sm:$0xff]
  %v27 = vld [vmem:[%s0 + $0x50] sm:$0xff]
  %v28 = vld [vmem:[%s0 + $0x58] sm:$0xff]
  %v29 = vld [vmem:[%s0 + $0x60] sm:$0xff]
  %v30 = vld [vmem:[%s0 + $0x68] sm:$0xff]
  %v31 = vld [vmem:[%s0 + $0x70] sm:$0xff]
  %v32 = vld [vmem:[%s0 + $0x78] sm:$0xff]
  %v33 = vld [vmem:[%s0 + $0x80] sm:$0xff]
  %v34 = vld [vmem:[%s0 + $0x88] sm:$0xff]
  %v35 = vld [vmem:[%s0 + $0x90] sm:$0xff]
  %v36 = vld [vmem:[%s0 + $0x98] sm:$0xff]
  %v37 = vld [vmem:[%s0 + $0xa0] sm:$0xff]
  %v38 = vld [vmem:[%s0 + $0xa8] sm:$0xff]
  %v39 = vld [vmem:[%s0 + $0xb0] sm:$0xff]
  %v40 = vld [vmem:[%s0 + $0xb8] sm:$0xff]
  %v41 = vld [vmem:[%s0 + $0xc0] sm:$0xff]
  %v42 = vld [vmem:[%s0 + $0xc8] sm:$0xff]
  %v43 = vld [vmem:[%s0 + $0xd0] sm:$0xff]
  %v44 = vld [vmem:[%s0 + $0xd8] sm:$0xff]
  %v45 = vld [vmem:[%s0 + $0xe0] sm:$0xff]
  %v46 = vld [vmem:[%s0 + $0xe8] sm:$0xff]
  %v47 = vld [vmem:[%s0 + $0xf0] sm:$0xff]
  %v48 = vld [vmem:[%s0 + $0xf8] sm:$0xff]
  %v49 = vld [vmem:[%s1] sm:$0xff]
  %v50 = vld [vmem:[%s1 + $0x8] sm:$0xff]
  %v51 = vld [vmem:[%s1 + $0x10] sm:$0xff]
  %v52 = vld [vmem:[%s1 + $0x18] sm:$0xff]
  %v53 = vld [vmem:[%s1 + $0x20] sm:$0xff]
  %v54 = vld [vmem:[%s1 + $0x28] sm:$0xff]
  %v55 = vld [vmem:[%s1 + $0x30] sm:$0xff]
  %v56 = vld [vmem:[%s1 + $0x38] sm:$0xff]
  %v57 = vld [vmem:[%s1 + $0x40] sm:$0xff]
  %v58 = vld [vmem:[%s1 + $0x48] sm:$0xff]
  %v59 = vld [vmem:[%s1 + $0x50] sm:$0xff]
  %v60 = vld [vmem:[%s1 + $0x58] sm:$0xff]
  %v61 = vld [vmem:[%s1 + $0x60] sm:$0xff]
  %v62 = vld [vmem:[%s1 + $0x68] sm:$0xff]
  %v63 = vld [vmem:[%s1 + $0x70] sm:$0xff]
  %v64 = vld [vmem:[%s1 + $0x78] sm:$0xff]
  %v65 = vld [vmem:[%s1 + $0x80] sm:$0xff]
  %v66 = vld [vmem:[%s1 + $0x88] sm:$0xff]
  %v67 = vld [vmem:[%s1 + $0x90] sm:$0xff]
  %v68 = vld [vmem:[%s1 + $0x98] sm:$0xff]
  %v69 = vld [vmem:[%s1 + $0xa0] sm:$0xff]
  %v70 = vld [vmem:[%s1 + $0xa8] sm:$0xff]
  %v71 = vld [vmem:[%s1 + $0xb0] sm:$0xff]
  %v72 = vld [vmem:[%s1 + $0xb8] sm:$0xff]
  %v73 = vld [vmem:[%s1 + $0xc0] sm:$0xff]
  %v74 = vld [vmem:[%s1 + $0xc8] sm:$0xff]
  %v75 = vld [vmem:[%s1 + $0xd0] sm:$0xff]
  %v76 = vld [vmem:[%s1 + $0xd8] sm:$0xff]
  %v77 = vld [vmem:[%s1 + $0xe0] sm:$0xff]
  %v78 = vld [vmem:[%s1 + $0xe8] sm:$0xff]
  %v79 = vld [vmem:[%s1 + $0xf0] sm:$0xff]
  %v80 = vld [vmem:[%s1 + $0xf8] sm:$0xff]
  %81 = vmatprep.subr.mxu0 0.0
  %82 = vmatpush1.msra.mxu0 %v64
  %83 = vmatprep.subr.mxu0 0.0
  %84 = vmatpush1.msra.mxu0 %v63
  %85 = vmatprep.subr.mxu0 0.0
  %86 = vmatpush1.msra.mxu0 %v62
  %87 = vmatprep.subr.mxu0 0.0
  %88 = vmatpush1.msra.mxu0 %v61
  %89 = vmatprep.subr.mxu0 0.0
  %90 = vmatpush1.msra.mxu0 %v60
  %91 = vmatprep.subr.mxu0 0.0
  %92 = vmatpush1.msra.mxu0 %v59
  %93 = vmatprep.subr.mxu0 0.0
  %94 = vmatpush1.msra.mxu0 %v58
  %95 = vmatprep.subr.mxu0 0.0
  %96 = vmatpush1.msra.mxu0 %v57
  %97 = vmatprep.subr.mxu0 0.0
  %98 = vmatpush1.msra.mxu0 %v56
  %99 = vmatprep.subr.mxu0 0.0
  %100 = vmatpush1.msra.mxu0 %v55
  %101 = vmatprep.subr.mxu0 0.0
  %102 = vmatpush1.msra.mxu0 %v54
  %103 = vmatprep.subr.mxu0 0.0
  %104 = vmatpush1.msra.mxu0 %v53
  %105 = vmatprep.subr.mxu0 0.0
  %106 = vmatpush1.msra.mxu0 %v52
  %107 = vmatprep.subr.mxu0 0.0
  %108 = vmatpush1.msra.mxu0 %v51
  %109 = vmatprep.subr.mxu0 0.0
  %110 = vmatpush1.msra.mxu0 %v50
  %111 = vmatprep.subr.mxu0 0.0
  %112 = vmatpush1.msra.mxu0 %v49
  %113 = vmatprep.subr.mxu0 0.0
  %114 = vmatpush2.msra.mxu0 %v80
  %115 = vmatprep.subr.mxu0 0.0
  %116 = vmatpush2.msra.mxu0 %v79
  %117 = vmatprep.subr.mxu0 0.0
  %118 = vmatpush2.msra.mxu0 %v78
  %119 = vmatprep.subr.mxu0 0.0
  %120 = vmatpush2.msra.mxu0 %v77
  %121 = vmatprep.subr.mxu0 0.0
  %122 = vmatpush2.msra.mxu0 %v76
  %123 = vmatprep.subr.mxu0 0.0
  %124 = vmatpush2.msra.mxu0 %v75
  %125 = vmatprep.subr.mxu0 0.0
  %126 = vmatpush2.msra.mxu0 %v74
  %127 = vmatprep.subr.mxu0 0.0
  %128 = vmatpush2.msra.mxu0 %v73
  %129 = vmatprep.subr.mxu0 0.0
  %130 = vmatpush2.msra.mxu0 %v72
  %131 = vmatprep.subr.mxu0 0.0
  %132 = vmatpush2.msra.mxu0 %v71
  %133 = vmatprep.subr.mxu0 0.0
  %134 = vmatpush2.msra.mxu0 %v70
  %135 = vmatprep.subr.mxu0 0.0
  %136 = vmatpush2.msra.mxu0 %v69
  %137 = vmatprep.subr.mxu0 0.0
  %138 = vmatpush2.msra.mxu0 %v68
  %139 = vmatprep.subr.mxu0 0.0
  %140 = vmatpush2.msra.mxu0 %v67
  %141 = vmatprep.subr.mxu0 0.0
  %142 = vmatpush2.msra.mxu0 %v66
  %143 = vmatprep.subr.mxu0 0.0
  %144 = vmatpush2.msra.mxu0 %v65
  %145 = vmatprep.mubr.f32.mxu0 %v18
  %146 = vmatmul.mubr.f32.gmra.mxu0 %v17
  %v147 = vpop.f32.mrf.mxu0
  %v148 = vadd.f32 0.0, %v147
  %v149 = vpop.f32.mrf.mxu0
  %150 = vmatprep.mubr.f32.mxu0 %v20
  %151 = vmatmul.mubr.f32.gmra.mxu0 %v19
  %v152 = vpop.f32.mrf.mxu0
  %v153 = vadd.f32 0.0, %v152
  %v154 = vpop.f32.mrf.mxu0
  %155 = vmatprep.mubr.f32.mxu0 %v22
  %156 = vmatmul.mubr.f32.gmra.mxu0 %v21
  %v157 = vpop.f32.mrf.mxu0
  %v158 = vadd.f32 0.0, %v157
  %v159 = vpop.f32.mrf.mxu0
  %160 = vmatprep.mubr.f32.mxu0 %v24
  %161 = vmatmul.mubr.f32.gmra.mxu0 %v23
  %v162 = vpop.f32.mrf.mxu0
  %v163 = vadd.f32 0.0, %v162
  %v164 = vpop.f32.mrf.mxu0
  %165 = vmatprep.mubr.f32.mxu0 %v26
  %166 = vmatmul.mubr.f32.gmra.mxu0 %v25
  %v167 = vpop.f32.mrf.mxu0
  %v168 = vadd.f32 0.0, %v167
  %v169 = vpop.f32.mrf.mxu0
  %170 = vmatprep.mubr.f32.mxu0 %v28
  %171 = vmatmul.mubr.f32.gmra.mxu0 %v27
  %v172 = vpop.f32.mrf.mxu0
  %v173 = vadd.f32 0.0, %v172
  %v174 = vpop.f32.mrf.mxu0
  %175 = vmatprep.mubr.f32.mxu0 %v30
  %176 = vmatmul.mubr.f32.gmra.mxu0 %v29
  %v177 = vpop.f32.mrf.mxu0
  %v178 = vadd.f32 0.0, %v177
  %v179 = vpop.f32.mrf.mxu0
  %180 = vmatprep.mubr.f32.mxu0 %v32
  %181 = vmatmul.mubr.f32.gmra.mxu0 %v31
  %v182 = vpop.f32.mrf.mxu0
  %v183 = vadd.f32 0.0, %v182
  %v184 = vpop.f32.mrf.mxu0
  %185 = vmatprep.mubr.f32.mxu0 %v34
  %186 = vmatmul.mubr.f32.gmra.mxu0 %v33
  %v187 = vpop.f32.mrf.mxu0
  %v188 = vadd.f32 0.0, %v187
  %v189 = vpop.f32.mrf.mxu0
  %190 = vmatprep.mubr.f32.mxu0 %v36
  %191 = vmatmul.mubr.f32.gmra.mxu0 %v35
  %v192 = vpop.f32.mrf.mxu0
  %v193 = vadd.f32 0.0, %v192
  %v194 = vpop.f32.mrf.mxu0
  %195 = vmatprep.mubr.f32.mxu0 %v38
  %196 = vmatmul.mubr.f32.gmra.mxu0 %v37
  %v197 = vpop.f32.mrf.mxu0
  %v198 = vadd.f32 0.0, %v197
  %v199 = vpop.f32.mrf.mxu0
  %200 = vmatprep.mubr.f32.mxu0 %v40
  %201 = vmatmul.mubr.f32.gmra.mxu0 %v39
  %v202 = vpop.f32.mrf.mxu0
  %v203 = vadd.f32 0.0, %v202
  %v204 = vpop.f32.mrf.mxu0
  %205 = vmatprep.mubr.f32.mxu0 %v42
  %206 = vmatmul.mubr.f32.gmra.mxu0 %v41
  %v207 = vpop.f32.mrf.mxu0
  %v208 = vadd.f32 0.0, %v207
  %v209 = vpop.f32.mrf.mxu0
  %210 = vmatprep.mubr.f32.mxu0 %v44
  %211 = vmatmul.mubr.f32.gmra.mxu0 %v43
  %v212 = vpop.f32.mrf.mxu0
  %v213 = vadd.f32 0.0, %v212
  %v214 = vpop.f32.mrf.mxu0
  %215 = vmatprep.mubr.f32.mxu0 %v46
  %216 = vmatmul.mubr.f32.gmra.mxu0 %v45
  %v217 = vpop.f32.mrf.mxu0
  %v218 = vadd.f32 0.0, %v217
  %v219 = vpop.f32.mrf.mxu0
  %220 = vmatprep.mubr.f32.mxu0 %v48
  %221 = vmatmul.mubr.f32.gmra.mxu0 %v47
  %v222 = vpop.f32.mrf.mxu0
  %v223 = vadd.f32 0.0, %v222
  %v224 = vpop.f32.mrf.mxu0
  %225 = vdwg.mxu0
  %vm226 = vcmask 261120
  %v227 = vsel %vm226, %v148, 0.0
  %v228 = vsel %vm226, %v153, 0.0
  %v229 = vadd.f32 %v227, %v228
  %v230 = vsel %vm226, %v158, 0.0
  %v231 = vadd.f32 %v229, %v230
  %v232 = vsel %vm226, %v163, 0.0
  %v233 = vadd.f32 %v231, %v232
  %v234 = vsel %vm226, %v168, 0.0
  %v235 = vadd.f32 %v233, %v234
  %v236 = vsel %vm226, %v173, 0.0
  %v237 = vadd.f32 %v235, %v236
  %v238 = vsel %vm226, %v178, 0.0
  %v239 = vadd.f32 %v237, %v238
  %v240 = vsel %vm226, %v183, 0.0
  %v241 = vadd.f32 %v239, %v240
  %v242 = vsel %vm226, %v188, 0.0
  %v243 = vadd.f32 %v241, %v242
  %v244 = vsel %vm226, %v193, 0.0
  %v245 = vadd.f32 %v243, %v244
  %v246 = vsel %vm226, %v198, 0.0
  %v247 = vadd.f32 %v245, %v246
  %v248 = vsel %vm226, %v203, 0.0
  %v249 = vadd.f32 %v247, %v248
  %v250 = vsel %vm226, %v208, 0.0
  %v251 = vadd.f32 %v249, %v250
  %v252 = vsel %vm226, %v213, 0.0
  %v253 = vadd.f32 %v251, %v252
  %v254 = vsel %vm226, %v218, 0.0
  %v255 = vadd.f32 %v253, %v254
  %v256 = vsel %vm226, %v223, 0.0
  %v257 = vadd.f32 %v255, %v256
  %v258 = vrot.slane %v257, 4
  %v259 = vadd.f32 %v257, %v258
  %v260 = vrot.slane %v259, 2
  %v261 = vadd.f32 %v259, %v260
  %v262 = vrot.slane %v261, 1
  %v263 = vadd.f32 %v261, %v262
  %v264 = vrcp.pop 128.0
  %v265 = vmul.f32 %v263, %v264
  %v266 = vsub.f32 %v148, %v265
  %v267 = vsub.f32 %v153, %v265
  %v268 = vsub.f32 %v158, %v265
  %v269 = vsub.f32 %v163, %v265
  %v270 = vsub.f32 %v168, %v265
  %v271 = vsub.f32 %v173, %v265
  %v272 = vsub.f32 %v178, %v265
  %v273 = vsub.f32 %v183, %v265
  %v274 = vsub.f32 %v188, %v265
  %v275 = vsub.f32 %v193, %v265
  %v276 = vsub.f32 %v198, %v265
  %v277 = vsub.f32 %v203, %v265
  %v278 = vsub.f32 %v208, %v265
  %v279 = vsub.f32 %v213, %v265
  %v280 = vsub.f32 %v218, %v265
  %v281 = vsub.f32 %v223, %v265
  %v282 = vmul.f32 %v266, %v266
  %v283 = vmul.f32 %v267, %v267
  %v284 = vmul.f32 %v268, %v268
  %v285 = vmul.f32 %v269, %v269
  %v286 = vmul.f32 %v270, %v270
  %v287 = vmul.f32 %v271, %v271
  %v288 = vmul.f32 %v272, %v272
  %v289 = vmul.f32 %v273, %v273
  %v290 = vmul.f32 %v274, %v274
  %v291 = vmul.f32 %v275, %v275
  %v292 = vmul.f32 %v276, %v276
  %v293 = vmul.f32 %v277, %v277
  %v294 = vmul.f32 %v278, %v278
  %v295 = vmul.f32 %v279, %v279
  %v296 = vmul.f32 %v280, %v280
  %v297 = vmul.f32 %v281, %v281
  %v298 = vsel %vm226, %v282, 0.0
  %v299 = vsel %vm226, %v283, 0.0
  %v300 = vadd.f32 %v298, %v299
  %v301 = vsel %vm226, %v284, 0.0
  %v302 = vadd.f32 %v300, %v301
  %v303 = vsel %vm226, %v285, 0.0
  %v304 = vadd.f32 %v302, %v303
  %v305 = vsel %vm226, %v286, 0.0
  %v306 = vadd.f32 %v304, %v305
  %v307 = vsel %vm226, %v287, 0.0
  %v308 = vadd.f32 %v306, %v307
  %v309 = vsel %vm226, %v288, 0.0
  %v310 = vadd.f32 %v308, %v309
  %v311 = vsel %vm226, %v289, 0.0
  %v312 = vadd.f32 %v310, %v311
  %v313 = vsel %vm226, %v290, 0.0
  %v314 = vadd.f32 %v312, %v313
  %v315 = vsel %vm226, %v291, 0.0
  %v316 = vadd.f32 %v314, %v315
  %v317 = vsel %vm226, %v292, 0.0
  %v318 = vadd.f32 %v316, %v317
  %v319 = vsel %vm226, %v293, 0.0
  %v320 = vadd.f32 %v318, %v319
  %v321 = vsel %vm226, %v294, 0.0
  %v322 = vadd.f32 %v320, %v321
  %v323 = vsel %vm226, %v295, 0.0
  %v324 = vadd.f32 %v322, %v323
  %v325 = vsel %vm226, %v296, 0.0
  %v326 = vadd.f32 %v324, %v325
  %v327 = vsel %vm226, %v297, 0.0
  %v328 = vadd.f32 %v326, %v327
  %v329 = vrot.slane %v328, 4
  %v330 = vadd.f32 %v328, %v329
  %v331 = vrot.slane %v330, 2
  %v332 = vadd.f32 %v330, %v331
  %v333 = vrot.slane %v332, 1
  %v334 = vadd.f32 %v332, %v333
  %v335 = vmul.f32 %v334, %v264
  %v336 = vld [vmem:[%s2] sm:$0x1]
  %v337 = vadd.f32 %v335, 1e-05
  %v338 = vrsqrt.pop %v337
  %v339 = vmul.f32 %v336, %v338
  %v341 = vlaneseq
  %v342 = vshrl.u32 %v341, 7
  %v343 = vsub.s32 0, %v342
  %v344 = vrot.slane %v339, %v343
  %v346 = vmul.f32 %v266, %v344
  %v347 = vmul.f32 %v267, %v344
  %v348 = vmul.f32 %v268, %v344
  %v349 = vmul.f32 %v269, %v344
  %v350 = vmul.f32 %v270, %v344
  %v351 = vmul.f32 %v271, %v344
  %v352 = vmul.f32 %v272, %v344
  %v353 = vmul.f32 %v273, %v344
  %v354 = vmul.f32 %v274, %v344
  %v355 = vmul.f32 %v275, %v344
  %v356 = vmul.f32 %v276, %v344
  %v357 = vmul.f32 %v277, %v344
  %v358 = vmul.f32 %v278, %v344
  %v359 = vmul.f32 %v279, %v344
  %v360 = vmul.f32 %v280, %v344
  %v361 = vmul.f32 %v281, %v344
  %v362 = vld [vmem:[%s3] sm:$0x1]
  %v364 = vlaneseq
  %v365 = vshrl.u32 %v364, 7
  %v366 = vsub.s32 0, %v365
  %v367 = vrot.slane %v362, %v366
  %v369 = vadd.f32 %v346, %v367
  %v370 = vadd.f32 %v347, %v367
  %v371 = vadd.f32 %v348, %v367
  %v372 = vadd.f32 %v349, %v367
  %v373 = vadd.f32 %v350, %v367
  %v374 = vadd.f32 %v351, %v367
  %v375 = vadd.f32 %v352, %v367
  %v376 = vadd.f32 %v353, %v367
  %v377 = vadd.f32 %v354, %v367
  %v378 = vadd.f32 %v355, %v367
  %v379 = vadd.f32 %v356, %v367
  %v380 = vadd.f32 %v357, %v367
  %v381 = vadd.f32 %v358, %v367
  %v382 = vadd.f32 %v359, %v367
  %v383 = vadd.f32 %v360, %v367
  %v384 = vadd.f32 %v361, %v367
  %v385 = vmax.f32 %v369, 0.0
  %v386 = vmax.f32 %v370, 0.0
  %v387 = vmax.f32 %v371, 0.0
  %v388 = vmax.f32 %v372, 0.0
  %v389 = vmax.f32 %v373, 0.0
  %v390 = vmax.f32 %v374, 0.0
  %v391 = vmax.f32 %v375, 0.0
  %v392 = vmax.f32 %v376, 0.0
  %v393 = vmax.f32 %v377, 0.0
  %v394 = vmax.f32 %v378, 0.0
  %v395 = vmax.f32 %v379, 0.0
  %v396 = vmax.f32 %v380, 0.0
  %v397 = vmax.f32 %v381, 0.0
  %v398 = vmax.f32 %v382, 0.0
  %v399 = vmax.f32 %v383, 0.0
  %v400 = vmax.f32 %v384, 0.0
  %401 = vst.msk [vmem:[%s4] sm:$0xff] %vm226, %v385
  %402 = vst.msk [vmem:[%s4 + $0x8] sm:$0xff] %vm226, %v386
  %403 = vst.msk [vmem:[%s4 + $0x10] sm:$0xff] %vm226, %v387
  %404 = vst.msk [vmem:[%s4 + $0x18] sm:$0xff] %vm226, %v388
  %405 = vst.msk [vmem:[%s4 + $0x20] sm:$0xff] %vm226, %v389
  %406 = vst.msk [vmem:[%s4 + $0x28] sm:$0xff] %vm226, %v390
  %407 = vst.msk [vmem:[%s4 + $0x30] sm:$0xff] %vm226, %v391
  %408 = vst.msk [vmem:[%s4 + $0x38] sm:$0xff] %vm226, %v392
  %409 = vst.msk [vmem:[%s4 + $0x40] sm:$0xff] %vm226, %v393
  %410 = vst.msk [vmem:[%s4 + $0x48] sm:$0xff] %vm226, %v394
  %411 = vst.msk [vmem:[%s4 + $0x50] sm:$0xff] %vm226, %v395
  %412 = vst.msk [vmem:[%s4 + $0x58] sm:$0xff] %vm226, %v396
  %413 = vst.msk [vmem:[%s4 + $0x60] sm:$0xff] %vm226, %v397
  %414 = vst.msk [vmem:[%s4 + $0x68] sm:$0xff] %vm226, %v398
  %415 = vst.msk [vmem:[%s4 + $0x70] sm:$0xff] %vm226, %v399
  %416 = vst.msk [vmem:[%s4 + $0x78] sm:$0xff] %vm226, %v400
  // Predicated region
  $region18: #{conv_encoder_forward.8} parent=0 // pred_check
    _
  $region19: #{conv_encoder_forward.8} parent=0 // pred_check_branch
    %418 = sbr.rel (0) target = $region21
  $region20: #{conv_encoder_forward.8} parent=0 // pred_region
    _
  $region21: #{conv_encoder_forward.8} parent=0 // pred_fallthru
    _
  // Predicated region
  $region22: #{conv_encoder_forward.8} parent=0 // pred_check
    _
  $region23: #{conv_encoder_forward.8} parent=0 // pred_check_branch
    %420 = sbr.rel (0) target = $region25
  $region24: #{conv_encoder_forward.8} parent=0 // pred_region
    _
  $region25: #{conv_encoder_forward.8} parent=0 // pred_fallthru
    _

// kernel: conv_encoder_forward.9
$region0: #{conv_encoder_forward.9}
  #allocation0 [shape = 'u32[]', space=smem, size = 0x4, offset = 0x4, fixed_abs, tag = 'smem constant byte address 0x4 - core index']
  #allocation1 [shape = 'u32[144,128]{1,0:T(1,128)}', space=vmem, size = 0x12000, scoped, tag = 'internal scratch']
  %s0 = inlined_call_operand.vmem [shape: f32[128,288], index: 0, kind: input, shape index: {}]
  %s1 = inlined_call_operand.vmem [shape: f32[288,32], index: 1, kind: input, shape index: {}]
  %s2 = inlined_call_operand.vmem [shape: f32[1,32], index: 2, kind: input, shape index: {}]
  %s3 = inlined_call_operand.vmem [shape: f32[1,32], index: 3, kind: input, shape index: {}]
  %s4 = inlined_call_operand.vmem [shape: f32[128,32], index: 4, kind: output, shape index: {}]
  %s5 = sld [smem:[#allocation0]]
  $region26: #{conv_encoder_forward.9} parent=0
    _
  %s7 = ssub.s32 1, %s5
  %s8 = scalar_select 0, %s7, %s5
  // Predicated region
  $region2: #{conv_encoder_forward.9} parent=0 // pred_check
    _
  $region3: #{conv_encoder_forward.9} parent=0 // pred_check_branch
    %10 = sbr.rel (0) target = $region5
  $region4: #{conv_encoder_forward.9} parent=0 // pred_region
    _
  $region5: #{conv_encoder_forward.9} parent=0 // pred_fallthru
    _
  // Predicated region
  $region6: #{conv_encoder_forward.9} parent=0 // pred_check
    _
  $region7: #{conv_encoder_forward.9} parent=0 // pred_check_branch
    %12 = sbr.rel (0) target = $region9
  $region8: #{conv_encoder_forward.9} parent=0 // pred_region
    _
  $region9: #{conv_encoder_forward.9} parent=0 // pred_fallthru
    _
  // Predicated region
  $region10: #{conv_encoder_forward.9} parent=0 // pred_check
    _
  $region11: #{conv_encoder_forward.9} parent=0 // pred_check_branch
    %14 = sbr.rel (0) target = $region13
  $region12: #{conv_encoder_forward.9} parent=0 // pred_region
    _
  $region13: #{conv_encoder_forward.9} parent=0 // pred_fallthru
    _
  // Predicated region
  $region14: #{conv_encoder_forward.9} parent=0 // pred_check
    _
  $region15: #{conv_encoder_forward.9} parent=0 // pred_check_branch
    %16 = sbr.rel (0) target = $region17
  $region16: #{conv_encoder_forward.9} parent=0 // pred_region
    _
  $region17: #{conv_encoder_forward.9} parent=0 // pred_fallthru
    _
  %v17 = vld [vmem:[%s0] sm:$0xff]
  %v18 = vld [vmem:[%s0 + $0x8] sm:$0xff]
  %v19 = vld [vmem:[%s0 + $0x10] sm:$0xff]
  %v20 = vld [vmem:[%s0 + $0x18] sm:$0xff]
  %v21 = vld [vmem:[%s0 + $0x20] sm:$0xff]
  %v22 = vld [vmem:[%s0 + $0x28] sm:$0xff]
  %v23 = vld [vmem:[%s0 + $0x30] sm:$0xff]
  %v24 = vld [vmem:[%s0 + $0x38] sm:$0xff]
  %v25 = vld [vmem:[%s0 + $0x40] sm:$0xff]
  %v26 = vld [vmem:[%s0 + $0x48] sm:$0xff]
  %v27 = vld [vmem:[%s0 + $0x50] sm:$0xff]
  %v28 = vld [vmem:[%s0 + $0x58] sm:$0xff]
  %v29 = vld [vmem:[%s0 + $0x60] sm:$0xff]
  %v30 = vld [vmem:[%s0 + $0x68] sm:$0xff]
  %v31 = vld [vmem:[%s0 + $0x70] sm:$0xff]
  %v32 = vld [vmem:[%s0 + $0x78] sm:$0xff]
  %v33 = vld [vmem:[%s0 + $0x80] sm:$0xff]
  %v34 = vld [vmem:[%s0 + $0x88] sm:$0xff]
  %v35 = vld [vmem:[%s0 + $0x90] sm:$0xff]
  %v36 = vld [vmem:[%s0 + $0x98] sm:$0xff]
  %v37 = vld [vmem:[%s0 + $0xa0] sm:$0xff]
  %v38 = vld [vmem:[%s0 + $0xa8] sm:$0xff]
  %v39 = vld [vmem:[%s0 + $0xb0] sm:$0xff]
  %v40 = vld [vmem:[%s0 + $0xb8] sm:$0xff]
  %v41 = vld [vmem:[%s0 + $0xc0] sm:$0xff]
  %v42 = vld [vmem:[%s0 + $0xc8] sm:$0xff]
  %v43 = vld [vmem:[%s0 + $0xd0] sm:$0xff]
  %v44 = vld [vmem:[%s0 + $0xd8] sm:$0xff]
  %v45 = vld [vmem:[%s0 + $0xe0] sm:$0xff]
  %v46 = vld [vmem:[%s0 + $0xe8] sm:$0xff]
  %v47 = vld [vmem:[%s0 + $0xf0] sm:$0xff]
  %v48 = vld [vmem:[%s0 + $0xf8] sm:$0xff]
  %v49 = vld [vmem:[%s0 + $0x100] sm:$0xff]
  %v50 = vld [vmem:[%s0 + $0x108] sm:$0xff]
  %v51 = vld [vmem:[%s0 + $0x110] sm:$0xff]
  %v52 = vld [vmem:[%s0 + $0x118] sm:$0xff]
  %v53 = vld [vmem:[%s0 + $0x120] sm:$0xff]
  %v54 = vld [vmem:[%s0 + $0x128] sm:$0xff]
  %v55 = vld [vmem:[%s0 + $0x130] sm:$0xff]
  %v56 = vld [vmem:[%s0 + $0x138] sm:$0xff]
  %v57 = vld [vmem:[%s0 + $0x140] sm:$0xff]
  %v58 = vld [vmem:[%s0 + $0x148] sm:$0xff]
  %v59 = vld [vmem:[%s0 + $0x150] sm:$0xff]
  %v60 = vld [vmem:[%s0 + $0x158] sm:$0xff]
  %v61 = vld [vmem:[%s0 + $0x160] sm:$0xff]
  %v62 = vld [vmem:[%s0 + $0x168] sm:$0xff]
  %v63 = vld [vmem:[%s0 + $0x170] sm:$0xff]
  %v64 = vld [vmem:[%s0 + $0x178] sm:$0xff]
  %v65 = vld [vmem:[%s1] sm:$0xff]
  %v66 = vld [vmem:[%s1 + $0x8] sm:$0xff]
  %v67 = vld [vmem:[%s1 + $0x10] sm:$0xff]
  %v68 = vld [vmem:[%s1 + $0x18] sm:$0xff]
  %v69 = vld [vmem:[%s1 + $0x20] sm:$0xff]
  %v70 = vld [vmem:[%s1 + $0x28] sm:$0xff]
  %v71 = vld [vmem:[%s1 + $0x30] sm:$0xff]
  %v72 = vld [vmem:[%s1 + $0x38] sm:$0xff]
  %v73 = vld [vmem:[%s1 + $0x40] sm:$0xff]
  %v74 = vld [vmem:[%s1 + $0x48] sm:$0xff]
  %v75 = vld [vmem:[%s1 + $0x50] sm:$0xff]
  %v76 = vld [vmem:[%s1 + $0x58] sm:$0xff]
  %v77 = vld [vmem:[%s1 + $0x60] sm:$0xff]
  %v78 = vld [vmem:[%s1 + $0x68] sm:$0xff]
  %v79 = vld [vmem:[%s1 + $0x70] sm:$0xff]
  %v80 = vld [vmem:[%s1 + $0x78] sm:$0xff]
  %v81 = vld [vmem:[%s1 + $0x80] sm:$0xff]
  %v82 = vld [vmem:[%s1 + $0x88] sm:$0xff]
  %v83 = vld [vmem:[%s1 + $0x90] sm:$0xff]
  %v84 = vld [vmem:[%s1 + $0x98] sm:$0xff]
  %v85 = vld [vmem:[%s1 + $0xa0] sm:$0xff]
  %v86 = vld [vmem:[%s1 + $0xa8] sm:$0xff]
  %v87 = vld [vmem:[%s1 + $0xb0] sm:$0xff]
  %v88 = vld [vmem:[%s1 + $0xb8] sm:$0xff]
  %v89 = vld [vmem:[%s1 + $0xc0] sm:$0xff]
  %v90 = vld [vmem:[%s1 + $0xc8] sm:$0xff]
  %v91 = vld [vmem:[%s1 + $0xd0] sm:$0xff]
  %v92 = vld [vmem:[%s1 + $0xd8] sm:$0xff]
  %v93 = vld [vmem:[%s1 + $0xe0] sm:$0xff]
  %v94 = vld [vmem:[%s1 + $0xe8] sm:$0xff]
  %v95 = vld [vmem:[%s1 + $0xf0] sm:$0xff]
  %v96 = vld [vmem:[%s1 + $0xf8] sm:$0xff]
  %v97 = vld [vmem:[%s1 + $0x100] sm:$0xff]
  %v98 = vld [vmem:[%s1 + $0x108] sm:$0xff]
  %v99 = vld [vmem:[%s1 + $0x110] sm:$0xff]
  %v100 = vld [vmem:[%s1 + $0x118] sm:$0xff]
  %vm101 = vcmask 261120
  %v103 = vsel %vm101, %v19, 0
  %v106 = vsel %vm101, %v22, 0
  %v109 = vsel %vm101, %v25, 0
  %v112 = vsel %vm101, %v28, 0
  %v115 = vsel %vm101, %v31, 0
  %v118 = vsel %vm101, %v34, 0
  %v121 = vsel %vm101, %v37, 0
  %v124 = vsel %vm101, %v40, 0
  %v127 = vsel %vm101, %v43, 0
  %v130 = vsel %vm101, %v46, 0
  %v133 = vsel %vm101, %v49, 0
  %v136 = vsel %vm101, %v52, 0
  %v139 = vsel %vm101, %v55, 0
  %v142 = vsel %vm101, %v58, 0
  %v145 = vsel %vm101, %v61, 0
  %v148 = vsel %vm101, %v64, 0
  %150 = vmatprep.subr.mxu0 0.0
  %151 = vmatpush1.msra.mxu0 %v80
  %152 = vmatprep.subr.mxu0 0.0
  %153 = vmatpush1.msra.mxu0 %v79
  %154 = vmatprep.subr.mxu0 0.0
  %155 = vmatpush1.msra.mxu0 %v78
  %156 = vmatprep.subr.mxu0 0.0
  %157 = vmatpush1.msra.mxu0 %v77
  %158 = vmatprep.subr.mxu0 0.0
  %159 = vmatpush1.msra.mxu0 %v76
  %160 = vmatprep.subr.mxu0 0.0
  %161 = vmatpush1.msra.mxu0 %v75
  %162 = vmatprep.subr.mxu0 0.0
  %163 = vmatpush1.msra.mxu0 %v74
  %164 = vmatprep.subr.mxu0 0.0
  %165 = vmatpush1.msra.mxu0 %v73
  %166 = vmatprep.subr.mxu0 0.0
  %167 = vmatpush1.msra.mxu0 %v72
  %168 = vmatprep.subr.mxu0 0.0
  %169 = vmatpush1.msra.mxu0 %v71
  %170 = vmatprep.subr.mxu0 0.0
  %171 = vmatpush1.msra.mxu0 %v70
  %172 = vmatprep.subr.mxu0 0.0
  %173 = vmatpush1.msra.mxu0 %v69
  %174 = vmatprep.subr.mxu0 0.0
  %175 = vmatpush1.msra.mxu0 %v68
  %176 = vmatprep.subr.mxu0 0.0
  %177 = vmatpush1.msra.mxu0 %v67
  %178 = vmatprep.subr.mxu0 0.0
  %179 = vmatpush1.msra.mxu0 %v66
  %180 = vmatprep.subr.mxu0 0.0
  %181 = vmatpush1.msra.mxu0 %v65
  %182 = vmatprep.subr.mxu0 0.0
  %183 = vmatpush2.msra.mxu0 %v96
  %184 = vmatprep.subr.mxu0 0.0
  %185 = vmatpush2.msra.mxu0 %v95
  %186 = vmatprep.subr.mxu0 0.0
  %187 = vmatpush2.msra.mxu0 %v94
  %188 = vmatprep.subr.mxu0 0.0
  %189 = vmatpush2.msra.mxu0 %v93
  %190 = vmatprep.subr.mxu0 0.0
  %191 = vmatpush2.msra.mxu0 %v92
  %192 = vmatprep.subr.mxu0 0.0
  %193 = vmatpush2.msra.mxu0 %v91
  %194 = vmatprep.subr.mxu0 0.0
  %195 = vmatpush2.msra.mxu0 %v90
  %196 = vmatprep.subr.mxu0 0.0
  %197 = vmatpush2.msra.mxu0 %v89
  %198 = vmatprep.subr.mxu0 0.0
  %199 = vmatpush2.msra.mxu0 %v88
  %200 = vmatprep.subr.mxu0 0.0
  %201 = vmatpush2.msra.mxu0 %v87
  %202 = vmatprep.subr.mxu0 0.0
  %203 = vmatpush2.msra.mxu0 %v86
  %204 = vmatprep.subr.mxu0 0.0
  %205 = vmatpush2.msra.mxu0 %v85
  %206 = vmatprep.subr.mxu0 0.0
  %207 = vmatpush2.msra.mxu0 %v84
  %208 = vmatprep.subr.mxu0 0.0
  %209 = vmatpush2.msra.mxu0 %v83
  %210 = vmatprep.subr.mxu0 0.0
  %211 = vmatpush2.msra.mxu0 %v82
  %212 = vmatprep.subr.mxu0 0.0
  %213 = vmatpush2.msra.mxu0 %v81
  %214 = vmatprep.mubr.f32.mxu0 %v18
  %215 = vmatmul.mubr.f32.gmra.mxu0 %v17
  %v216 = vpop.f32.mrf.mxu0
  %v217 = vadd.f32 0.0, %v216
  %v218 = vpop.f32.mrf.mxu0
  %219 = vmatprep.mubr.f32.mxu0 %v21
  %220 = vmatmul.mubr.f32.gmra.mxu0 %v20
  %v221 = vpop.f32.mrf.mxu0
  %v222 = vadd.f32 0.0, %v221
  %v223 = vpop.f32.mrf.mxu0
  %224 = vmatprep.mubr.f32.mxu0 %v24
  %225 = vmatmul.mubr.f32.gmra.mxu0 %v23
  %v226 = vpop.f32.mrf.mxu0
  %v227 = vadd.f32 0.0, %v226
  %v228 = vpop.f32.mrf.mxu0
  %229 = vmatprep.mubr.f32.mxu0 %v27
  %230 = vmatmul.mubr.f32.gmra.mxu0 %v26
  %v231 = vpop.f32.mrf.mxu0
  %v232 = vadd.f32 0.0, %v231
  %v233 = vpop.f32.mrf.mxu0
  %234 = vmatprep.mubr.f32.mxu0 %v30
  %235 = vmatmul.mubr.f32.gmra.mxu0 %v29
  %v236 = vpop.f32.mrf.mxu0
  %v237 = vadd.f32 0.0, %v236
  %v238 = vpop.f32.mrf.mxu0
  %239 = vmatprep.mubr.f32.mxu0 %v33
  %240 = vmatmul.mubr.f32.gmra.mxu0 %v32
  %v241 = vpop.f32.mrf.mxu0
  %v242 = vadd.f32 0.0, %v241
  %v243 = vpop.f32.mrf.mxu0
  %244 = vmatprep.mubr.f32.mxu0 %v36
  %245 = vmatmul.mubr.f32.gmra.mxu0 %v35
  %v246 = vpop.f32.mrf.mxu0
  %v247 = vadd.f32 0.0, %v246
  %v248 = vpop.f32.mrf.mxu0
  %249 = vmatprep.mubr.f32.mxu0 %v39
  %250 = vmatmul.mubr.f32.gmra.mxu0 %v38
  %v251 = vpop.f32.mrf.mxu0
  %v252 = vadd.f32 0.0, %v251
  %v253 = vpop.f32.mrf.mxu0
  %254 = vmatprep.mubr.f32.mxu0 %v42
  %255 = vmatmul.mubr.f32.gmra.mxu0 %v41
  %v256 = vpop.f32.mrf.mxu0
  %v257 = vadd.f32 0.0, %v256
  %v258 = vpop.f32.mrf.mxu0
  %259 = vmatprep.mubr.f32.mxu0 %v45
  %260 = vmatmul.mubr.f32.gmra.mxu0 %v44
  %v261 = vpop.f32.mrf.mxu0
  %v262 = vadd.f32 0.0, %v261
  %v263 = vpop.f32.mrf.mxu0
  %264 = vmatprep.mubr.f32.mxu0 %v48
  %265 = vmatmul.mubr.f32.gmra.mxu0 %v47
  %v266 = vpop.f32.mrf.mxu0
  %v267 = vadd.f32 0.0, %v266
  %v268 = vpop.f32.mrf.mxu0
  %269 = vmatprep.mubr.f32.mxu0 %v51
  %270 = vmatmul.mubr.f32.gmra.mxu0 %v50
  %v271 = vpop.f32.mrf.mxu0
  %v272 = vadd.f32 0.0, %v271
  %v273 = vpop.f32.mrf.mxu0
  %274 = vmatprep.mubr.f32.mxu0 %v54
  %275 = vmatmul.mubr.f32.gmra.mxu0 %v53
  %v276 = vpop.f32.mrf.mxu0
  %v277 = vadd.f32 0.0, %v276
  %v278 = vpop.f32.mrf.mxu0
  %279 = vmatprep.mubr.f32.mxu0 %v57
  %280 = vmatmul.mubr.f32.gmra.mxu0 %v56
  %v281 = vpop.f32.mrf.mxu0
  %v282 = vadd.f32 0.0, %v281
  %v283 = vpop.f32.mrf.mxu0
  %284 = vmatprep.mubr.f32.mxu0 %v60
  %285 = vmatmul.mubr.f32.gmra.mxu0 %v59
  %v286 = vpop.f32.mrf.mxu0
  %v287 = vadd.f32 0.0, %v286
  %v288 = vpop.f32.mrf.mxu0
  %289 = vmatprep.mubr.f32.mxu0 %v63
  %290 = vmatmul.mubr.f32.gmra.mxu0 %v62
  %v291 = vpop.f32.mrf.mxu0
  %v292 = vadd.f32 0.0, %v291
  %v293 = vpop.f32.mrf.mxu0
  %294 = vdwg.mxu0
  %295 = vmatprep.subr.mxu0 0.0
  %296 = vmatpush1.msra.mxu0 0.0
  %297 = vmatprep.subr.mxu0 0.0
  %298 = vmatpush1.msra.mxu0 0.0
  %299 = vmatprep.subr.mxu0 0.0
  %300 = vmatpush1.msra.mxu0 0.0
  %301 = vmatprep.subr.mxu0 0.0
  %302 = vmatpush1.msra.mxu0 0.0
  %303 = vmatprep.subr.mxu0 0.0
  %304 = vmatpush1.msra.mxu0 0.0
  %305 = vmatprep.subr.mxu0 0.0
  %306 = vmatpush1.msra.mxu0 0.0
  %307 = vmatprep.subr.mxu0 0.0
  %308 = vmatpush1.msra.mxu0 0.0
  %309 = vmatprep.subr.mxu0 0.0
  %310 = vmatpush1.msra.mxu0 0.0
  %311 = vmatprep.subr.mxu0 0.0
  %312 = vmatpush1.msra.mxu0 0.0
  %313 = vmatprep.subr.mxu0 0.0
  %314 = vmatpush1.msra.mxu0 0.0
  %315 = vmatprep.subr.mxu0 0.0
  %316 = vmatpush1.msra.mxu0 0.0
  %317 = vmatprep.subr.mxu0 0.0
  %318 = vmatpush1.msra.mxu0 0.0
  %319 = vmatprep.subr.mxu0 0.0
  %320 = vmatpush1.msra.mxu0 %v100
  %321 = vmatprep.subr.mxu0 0.0
  %322 = vmatpush1.msra.mxu0 %v99
  %323 = vmatprep.subr.mxu0 0.0
  %324 = vmatpush1.msra.mxu0 %v98
  %325 = vmatprep.subr.mxu0 0.0
  %326 = vmatpush1.msra.mxu0 %v97
  %327 = vmatprep.subr.mxu0 0.0
  %328 = vmatpush2.msra.mxu0 0.0
  %329 = vmatprep.subr.mxu0 0.0
  %330 = vmatpush2.msra.mxu0 0.0
  %331 = vmatprep.subr.mxu0 0.0
  %332 = vmatpush2.msra.mxu0 0.0
  %333 = vmatprep.subr.mxu0 0.0
  %334 = vmatpush2.msra.mxu0 0.0
  %335 = vmatprep.subr.mxu0 0.0
  %336 = vmatpush2.msra.mxu0 0.0
  %337 = vmatprep.subr.mxu0 0.0
  %338 = vmatpush2.msra.mxu0 0.0
  %339 = vmatprep.subr.mxu0 0.0
  %340 = vmatpush2.msra.mxu0 0.0
  %341 = vmatprep.subr.mxu0 0.0
  %342 = vmatpush2.msra.mxu0 0.0
  %343 = vmatprep.subr.mxu0 0.0
  %344 = vmatpush2.msra.mxu0 0.0
  %345 = vmatprep.subr.mxu0 0.0
  %346 = vmatpush2.msra.mxu0 0.0
  %347 = vmatprep.subr.mxu0 0.0
  %348 = vmatpush2.msra.mxu0 0.0
  %349 = vmatprep.subr.mxu0 0.0
  %350 = vmatpush2.msra.mxu0 0.0
  %351 = vmatprep.subr.mxu0 0.0
  %352 = vmatpush2.msra.mxu0 0.0
  %353 = vmatprep.subr.mxu0 0.0
  %354 = vmatpush2.msra.mxu0 0.0
  %355 = vmatprep.subr.mxu0 0.0
  %356 = vmatpush2.msra.mxu0 0.0
  %357 = vmatprep.subr.mxu0 0.0
  %358 = vmatpush2.msra.mxu0 0.0
  %359 = vmatprep.mubr.f32.mxu0 0.0
  %360 = vmatmul.mubr.f32.gmra.mxu0 %v103
  %v361 = vpop.f32.mrf.mxu0
  %v362 = vadd.f32 %v217, %v361
  %v363 = vpop.f32.mrf.mxu0
  %364 = vmatprep.mubr.f32.mxu0 0.0
  %365 = vmatmul.mubr.f32.gmra.mxu0 %v106
  %v366 = vpop.f32.mrf.mxu0
  %v367 = vadd.f32 %v222, %v366
  %v368 = vpop.f32.mrf.mxu0
  %369 = vmatprep.mubr.f32.mxu0 0.0
  %370 = vmatmul.mubr.f32.gmra.mxu0 %v109
  %v371 = vpop.f32.mrf.mxu0
  %v372 = vadd.f32 %v227, %v371
  %v373 = vpop.f32.mrf.mxu0
  %374 = vmatprep.mubr.f32.mxu0 0.0
  %375 = vmatmul.mubr.f32.gmra.mxu0 %v112
  %v376 = vpop.f32.mrf.mxu0
  %v377 = vadd.f32 %v232, %v376
  %v378 = vpop.f32.mrf.mxu0
  %379 = vmatprep.mubr.f32.mxu0 0.0
  %380 = vmatmul.mubr.f32.gmra.mxu0 %v115
  %v381 = vpop.f32.mrf.mxu0
  %v382 = vadd.f32 %v237, %v381
  %v383 = vpop.f32.mrf.mxu0
  %384 = vmatprep.mubr.f32.mxu0 0.0
  %385 = vmatmul.mubr.f32.gmra.mxu0 %v118
  %v386 = vpop.f32.mrf.mxu0
  %v387 = vadd.f32 %v242, %v386
  %v388 = vpop.f32.mrf.mxu0
  %389 = vmatprep.mubr.f32.mxu0 0.0
  %390 = vmatmul.mubr.f32.gmra.mxu0 %v121
  %v391 = vpop.f32.mrf.mxu0
  %v392 = vadd.f32 %v247, %v391
  %v393 = vpop.f32.mrf.mxu0
  %394 = vmatprep.mubr.f32.mxu0 0.0
  %395 = vmatmul.mubr.f32.gmra.mxu0 %v124
  %v396 = vpop.f32.mrf.mxu0
  %v397 = vadd.f32 %v252, %v396
  %v398 = vpop.f32.mrf.mxu0
  %399 = vmatprep.mubr.f32.mxu0 0.0
  %400 = vmatmul.mubr.f32.gmra.mxu0 %v127
  %v401 = vpop.f32.mrf.mxu0
  %v402 = vadd.f32 %v257, %v401
  %v403 = vpop.f32.mrf.mxu0
  %404 = vmatprep.mubr.f32.mxu0 0.0
  %405 = vmatmul.mubr.f32.gmra.mxu0 %v130
  %v406 = vpop.f32.mrf.mxu0
  %v407 = vadd.f32 %v262, %v406
  %v408 = vpop.f32.mrf.mxu0
  %409 = vmatprep.mubr.f32.mxu0 0.0
  %410 = vmatmul.mubr.f32.gmra.mxu0 %v133
  %v411 = vpop.f32.mrf.mxu0
  %v412 = vadd.f32 %v267, %v411
  %v413 = vpop.f32.mrf.mxu0
  %414 = vmatprep.mubr.f32.mxu0 0.0
  %415 = vmatmul.mubr.f32.gmra.mxu0 %v136
  %v416 = vpop.f32.mrf.mxu0
  %v417 = vadd.f32 %v272, %v416
  %v418 = vpop.f32.mrf.mxu0
  %419 = vmatprep.mubr.f32.mxu0 0.0
  %420 = vmatmul.mubr.f32.gmra.mxu0 %v139
  %v421 = vpop.f32.mrf.mxu0
  %v422 = vadd.f32 %v277, %v421
  %v423 = vpop.f32.mrf.mxu0
  %424 = vmatprep.mubr.f32.mxu0 0.0
  %425 = vmatmul.mubr.f32.gmra.mxu0 %v142
  %v426 = vpop.f32.mrf.mxu0
  %v427 = vadd.f32 %v282, %v426
  %v428 = vpop.f32.mrf.mxu0
  %429 = vmatprep.mubr.f32.mxu0 0.0
  %430 = vmatmul.mubr.f32.gmra.mxu0 %v145
  %v431 = vpop.f32.mrf.mxu0
  %v432 = vadd.f32 %v287, %v431
  %v433 = vpop.f32.mrf.mxu0
  %434 = vmatprep.mubr.f32.mxu0 0.0
  %435 = vmatmul.mubr.f32.gmra.mxu0 %v148
  %v436 = vpop.f32.mrf.mxu0
  %v437 = vadd.f32 %v292, %v436
  %v438 = vpop.f32.mrf.mxu0
  %439 = vdwg.mxu0
  %v440 = vsel %vm101, %v362, 0.0
  %v441 = vsel %vm101, %v367, 0.0
  %v442 = vadd.f32 %v440, %v441
  %v443 = vsel %vm101, %v372, 0.0
  %v444 = vadd.f32 %v442, %v443
  %v445 = vsel %vm101, %v377, 0.0
  %v446 = vadd.f32 %v444, %v445
  %v447 = vsel %vm101, %v382, 0.0
  %v448 = vadd.f32 %v446, %v447
  %v449 = vsel %vm101, %v387, 0.0
  %v450 = vadd.f32 %v448, %v449
  %v451 = vsel %vm101, %v392, 0.0
  %v452 = vadd.f32 %v450, %v451
  %v453 = vsel %vm101, %v397, 0.0
  %v454 = vadd.f32 %v452, %v453
  %v455 = vsel %vm101, %v402, 0.0
  %v456 = vadd.f32 %v454, %v455
  %v457 = vsel %vm101, %v407, 0.0
  %v458 = vadd.f32 %v456, %v457
  %v459 = vsel %vm101, %v412, 0.0
  %v460 = vadd.f32 %v458, %v459
  %v461 = vsel %vm101, %v417, 0.0
  %v462 = vadd.f32 %v460, %v461
  %v463 = vsel %vm101, %v422, 0.0
  %v464 = vadd.f32 %v462, %v463
  %v465 = vsel %vm101, %v427, 0.0
  %v466 = vadd.f32 %v464, %v465
  %v467 = vsel %vm101, %v432, 0.0
  %v468 = vadd.f32 %v466, %v467
  %v469 = vsel %vm101, %v437, 0.0
  %v470 = vadd.f32 %v468, %v469
  %v471 = vrot.slane %v470, 4
  %v472 = vadd.f32 %v470, %v471
  %v473 = vrot.slane %v472, 2
  %v474 = vadd.f32 %v472, %v473
  %v475 = vrot.slane %v474, 1
  %v476 = vadd.f32 %v474, %v475
  %v477 = vrcp.pop 128.0
  %v478 = vmul.f32 %v476, %v477
  %v479 = vsub.f32 %v362, %v478
  %v480 = vsub.f32 %v367, %v478
  %v481 = vsub.f32 %v372, %v478
  %v482 = vsub.f32 %v377, %v478
  %v483 = vsub.f32 %v382, %v478
  %v484 = vsub.f32 %v387, %v478
  %v485 = vsub.f32 %v392, %v478
  %v486 = vsub.f32 %v397, %v478
  %v487 = vsub.f32 %v402, %v478
  %v488 = vsub.f32 %v407, %v478
  %v489 = vsub.f32 %v412, %v478
  %v490 = vsub.f32 %v417, %v478
  %v491 = vsub.f32 %v422, %v478
  %v492 = vsub.f32 %v427, %v478
  %v493 = vsub.f32 %v432, %v478
  %v494 = vsub.f32 %v437, %v478
  %v495 = vmul.f32 %v479, %v479
  %v496 = vmul.f32 %v480, %v480
  %v497 = vmul.f32 %v481, %v481
  %v498 = vmul.f32 %v482, %v482
  %v499 = vmul.f32 %v483, %v483
  %v500 = vmul.f32 %v484, %v484
  %v501 = vmul.f32 %v485, %v485
  %v502 = vmul.f32 %v486, %v486
  %v503 = vmul.f32 %v487, %v487
  %v504 = vmul.f32 %v488, %v488
  %v505 = vmul.f32 %v489, %v489
  %v506 = vmul.f32 %v490, %v490
  %v507 = vmul.f32 %v491, %v491
  %v508 = vmul.f32 %v492, %v492
  %v509 = vmul.f32 %v493, %v493
  %v510 = vmul.f32 %v494, %v494
  %v511 = vsel %vm101, %v495, 0.0
  %v512 = vsel %vm101, %v496, 0.0
  %v513 = vadd.f32 %v511, %v512
  %v514 = vsel %vm101, %v497, 0.0
  %v515 = vadd.f32 %v513, %v514
  %v516 = vsel %vm101, %v498, 0.0
  %v517 = vadd.f32 %v515, %v516
  %v518 = vsel %vm101, %v499, 0.0
  %v519 = vadd.f32 %v517, %v518
  %v520 = vsel %vm101, %v500, 0.0
  %v521 = vadd.f32 %v519, %v520
  %v522 = vsel %vm101, %v501, 0.0
  %v523 = vadd.f32 %v521, %v522
  %v524 = vsel %vm101, %v502, 0.0
  %v525 = vadd.f32 %v523, %v524
  %v526 = vsel %vm101, %v503, 0.0
  %v527 = vadd.f32 %v525, %v526
  %v528 = vsel %vm101, %v504, 0.0
  %v529 = vadd.f32 %v527, %v528
  %v530 = vsel %vm101, %v505, 0.0
  %v531 = vadd.f32 %v529, %v530
  %v532 = vsel %vm101, %v506, 0.0
  %v533 = vadd.f32 %v531, %v532
  %v534 = vsel %vm101, %v507, 0.0
  %v535 = vadd.f32 %v533, %v534
  %v536 = vsel %vm101, %v508, 0.0
  %v537 = vadd.f32 %v535, %v536
  %v538 = vsel %vm101, %v509, 0.0
  %v539 = vadd.f32 %v537, %v538
  %v540 = vsel %vm101, %v510, 0.0
  %v541 = vadd.f32 %v539, %v540
  %v542 = vrot.slane %v541, 4
  %v543 = vadd.f32 %v541, %v542
  %v544 = vrot.slane %v543, 2
  %v545 = vadd.f32 %v543, %v544
  %v546 = vrot.slane %v545, 1
  %v547 = vadd.f32 %v545, %v546
  %v548 = vmul.f32 %v547, %v477
  %v549 = vld [vmem:[%s2] sm:$0x1]
  %v550 = vadd.f32 %v548, 1e-05
  %v551 = vrsqrt.pop %v550
  %v552 = vmul.f32 %v549, %v551
  %v554 = vlaneseq
  %v555 = vshrl.u32 %v554, 7
  %v556 = vsub.s32 0, %v555
  %v557 = vrot.slane %v552, %v556
  %v559 = vmul.f32 %v479, %v557
  %v560 = vmul.f32 %v480, %v557
  %v561 = vmul.f32 %v481, %v557
  %v562 = vmul.f32 %v482, %v557
  %v563 = vmul.f32 %v483, %v557
  %v564 = vmul.f32 %v484, %v557
  %v565 = vmul.f32 %v485, %v557
  %v566 = vmul.f32 %v486, %v557
  %v567 = vmul.f32 %v487, %v557
  %v568 = vmul.f32 %v488, %v557
  %v569 = vmul.f32 %v489, %v557
  %v570 = vmul.f32 %v490, %v557
  %v571 = vmul.f32 %v491, %v557
  %v572 = vmul.f32 %v492, %v557
  %v573 = vmul.f32 %v493, %v557
  %v574 = vmul.f32 %v494, %v557
  %v575 = vld [vmem:[%s3] sm:$0x1]
  %v577 = vlaneseq
  %v578 = vshrl.u32 %v577, 7
  %v579 = vsub.s32 0, %v578
  %v580 = vrot.slane %v575, %v579
  %v582 = vadd.f32 %v559, %v580
  %v583 = vadd.f32 %v560, %v580
  %v584 = vadd.f32 %v561, %v580
  %v585 = vadd.f32 %v562, %v580
  %v586 = vadd.f32 %v563, %v580
  %v587 = vadd.f32 %v564, %v580
  %v588 = vadd.f32 %v565, %v580
  %v589 = vadd.f32 %v566, %v580
  %v590 = vadd.f32 %v567, %v580
  %v591 = vadd.f32 %v568, %v580
  %v592 = vadd.f32 %v569, %v580
  %v593 = vadd.f32 %v570, %v580
  %v594 = vadd.f32 %v571, %v580
  %v595 = vadd.f32 %v572, %v580
  %v596 = vadd.f32 %v573, %v580
  %v597 = vadd.f32 %v574, %v580
  %v598 = vmax.f32 %v582, 0.0
  %v599 = vmax.f32 %v583, 0.0
  %v600 = vmax.f32 %v584, 0.0
  %v601 = vmax.f32 %v585, 0.0
  %v602 = vmax.f32 %v586, 0.0
  %v603 = vmax.f32 %v587, 0.0
  %v604 = vmax.f32 %v588, 0.0
  %v605 = vmax.f32 %v589, 0.0
  %v606 = vmax.f32 %v590, 0.0
  %v607 = vmax.f32 %v591, 0.0
  %v608 = vmax.f32 %v592, 0.0
  %v609 = vmax.f32 %v593, 0.0
  %v610 = vmax.f32 %v594, 0.0
  %v611 = vmax.f32 %v595, 0.0
  %v612 = vmax.f32 %v596, 0.0
  %v613 = vmax.f32 %v597, 0.0
  %614 = vst.msk [vmem:[%s4] sm:$0xff] %vm101, %v598
  %615 = vst.msk [vmem:[%s4 + $0x8] sm:$0xff] %vm101, %v599
  %616 = vst.msk [vmem:[%s4 + $0x10] sm:$0xff] %vm101, %v600
  %617 = vst.msk [vmem:[%s4 + $0x18] sm:$0xff] %vm101, %v601
  %618 = vst.msk [vmem:[%s4 + $0x20] sm:$0xff] %vm101, %v602
  %619 = vst.msk [vmem:[%s4 + $0x28] sm:$0xff] %vm101, %v603
  %620 = vst.msk [vmem:[%s4 + $0x30] sm:$0xff] %vm101, %v604
  %621 = vst.msk [vmem:[%s4 + $0x38] sm:$0xff] %vm101, %v605
  %622 = vst.msk [vmem:[%s4 + $0x40] sm:$0xff] %vm101, %v606
  %623 = vst.msk [vmem:[%s4 + $0x48] sm:$0xff] %vm101, %v607
  %624 = vst.msk [vmem:[%s4 + $0x50] sm:$0xff] %vm101, %v608
  %625 = vst.msk [vmem:[%s4 + $0x58] sm:$0xff] %vm101, %v609
  %626 = vst.msk [vmem:[%s4 + $0x60] sm:$0xff] %vm101, %v610
  %627 = vst.msk [vmem:[%s4 + $0x68] sm:$0xff] %vm101, %v611
  %628 = vst.msk [vmem:[%s4 + $0x70] sm:$0xff] %vm101, %v612
  %629 = vst.msk [vmem:[%s4 + $0x78] sm:$0xff] %vm101, %v613
  // Predicated region
  $region18: #{conv_encoder_forward.9} parent=0 // pred_check
    _
  $region19: #{conv_encoder_forward.9} parent=0 // pred_check_branch
    %631 = sbr.rel (0) target = $region21
  $region20: #{conv_encoder_forward.9} parent=0 // pred_region
    _
  $region21: #{conv_encoder_forward.9} parent=0 // pred_fallthru
    _
  // Predicated region
  $region22: #{conv_encoder_forward.9} parent=0 // pred_check
    _
  $region23: #{conv_encoder_forward.9} parent=0 // pred_check_branch
    %633 = sbr.rel (0) target = $region25
  $region24: #{conv_encoder_forward.9} parent=0 // pred_region
    _
  $region25: #{conv_encoder_forward.9} parent=0 // pred_fallthru
    _

// kernel: conv_encoder_forward.11
$region0: #{conv_encoder_forward.11}
  #allocation0 [shape = 'u32[]', space=smem, size = 0x4, offset = 0x4, fixed_abs, tag = 'smem constant byte address 0x4 - core index']
  #allocation1 [shape = 'u32[144,128]{1,0:T(1,128)}', space=vmem, size = 0x12000, scoped, tag = 'internal scratch']
  %s0 = inlined_call_operand.vmem [shape: f32[32,512], index: 0, kind: input, shape index: {}]
  %s1 = inlined_call_operand.vmem [shape: f32[512,32], index: 1, kind: input, shape index: {}]
  %s2 = inlined_call_operand.vmem [shape: f32[1,32], index: 2, kind: input, shape index: {}]
  %s3 = inlined_call_operand.vmem [shape: f32[1,32], index: 3, kind: input, shape index: {}]
  %s4 = inlined_call_operand.vmem [shape: f32[32,32], index: 4, kind: output, shape index: {}]
  %s5 = sld [smem:[#allocation0]]
  $region26: #{conv_encoder_forward.11} parent=0
    _
  %s7 = ssub.s32 1, %s5
  %s8 = scalar_select 0, %s7, %s5
  // Predicated region
  $region2: #{conv_encoder_forward.11} parent=0 // pred_check
    _
  $region3: #{conv_encoder_forward.11} parent=0 // pred_check_branch
    %10 = sbr.rel (0) target = $region5
  $region4: #{conv_encoder_forward.11} parent=0 // pred_region
    _
  $region5: #{conv_encoder_forward.11} parent=0 // pred_fallthru
    _
  // Predicated region
  $region6: #{conv_encoder_forward.11} parent=0 // pred_check
    _
  $region7: #{conv_encoder_forward.11} parent=0 // pred_check_branch
    %12 = sbr.rel (0) target = $region9
  $region8: #{conv_encoder_forward.11} parent=0 // pred_region
    _
  $region9: #{conv_encoder_forward.11} parent=0 // pred_fallthru
    _
  // Predicated region
  $region10: #{conv_encoder_forward.11} parent=0 // pred_check
    _
  $region11: #{conv_encoder_forward.11} parent=0 // pred_check_branch
    %14 = sbr.rel (0) target = $region13
  $region12: #{conv_encoder_forward.11} parent=0 // pred_region
    _
  $region13: #{conv_encoder_forward.11} parent=0 // pred_fallthru
    _
  // Predicated region
  $region14: #{conv_encoder_forward.11} parent=0 // pred_check
    _
  $region15: #{conv_encoder_forward.11} parent=0 // pred_check_branch
    %16 = sbr.rel (0) target = $region17
  $region16: #{conv_encoder_forward.11} parent=0 // pred_region
    _
  $region17: #{conv_encoder_forward.11} parent=0 // pred_fallthru
    _
  %v17 = vld [vmem:[%s0] sm:$0xff]
  %v18 = vld [vmem:[%s0 + $0x8] sm:$0xff]
  %v19 = vld [vmem:[%s0 + $0x10] sm:$0xff]
  %v20 = vld [vmem:[%s0 + $0x18] sm:$0xff]
  %v21 = vld [vmem:[%s0 + $0x20] sm:$0xff]
  %v22 = vld [vmem:[%s0 + $0x28] sm:$0xff]
  %v23 = vld [vmem:[%s0 + $0x30] sm:$0xff]
  %v24 = vld [vmem:[%s0 + $0x38] sm:$0xff]
  %v25 = vld [vmem:[%s0 + $0x40] sm:$0xff]
  %v26 = vld [vmem:[%s0 + $0x48] sm:$0xff]
  %v27 = vld [vmem:[%s0 + $0x50] sm:$0xff]
  %v28 = vld [vmem:[%s0 + $0x58] sm:$0xff]
  %v29 = vld [vmem:[%s0 + $0x60] sm:$0xff]
  %v30 = vld [vmem:[%s0 + $0x68] sm:$0xff]
  %v31 = vld [vmem:[%s0 + $0x70] sm:$0xff]
  %v32 = vld [vmem:[%s0 + $0x78] sm:$0xff]
  %v33 = vld [vmem:[%s1] sm:$0xff]
  %v34 = vld [vmem:[%s1 + $0x8] sm:$0xff]
  %v35 = vld [vmem:[%s1 + $0x10] sm:$0xff]
  %v36 = vld [vmem:[%s1 + $0x18] sm:$0xff]
  %v37 = vld [vmem:[%s1 + $0x20] sm:$0xff]
  %v38 = vld [vmem:[%s1 + $0x28] sm:$0xff]
  %v39 = vld [vmem:[%s1 + $0x30] sm:$0xff]
  %v40 = vld [vmem:[%s1 + $0x38] sm:$0xff]
  %v41 = vld [vmem:[%s1 + $0x40] sm:$0xff]
  %v42 = vld [vmem:[%s1 + $0x48] sm:$0xff]
  %v43 = vld [vmem:[%s1 + $0x50] sm:$0xff]
  %v44 = vld [vmem:[%s1 + $0x58] sm:$0xff]
  %v45 = vld [vmem:[%s1 + $0x60] sm:$0xff]
  %v46 = vld [vmem:[%s1 + $0x68] sm:$0xff]
  %v47 = vld [vmem:[%s1 + $0x70] sm:$0xff]
  %v48 = vld [vmem:[%s1 + $0x78] sm:$0xff]
  %v49 = vld [vmem:[%s1 + $0x80] sm:$0xff]
  %v50 = vld [vmem:[%s1 + $0x88] sm:$0xff]
  %v51 = vld [vmem:[%s1 + $0x90] sm:$0xff]
  %v52 = vld [vmem:[%s1 + $0x98] sm:$0xff]
  %v53 = vld [vmem:[%s1 + $0xa0] sm:$0xff]
  %v54 = vld [vmem:[%s1 + $0xa8] sm:$0xff]
  %v55 = vld [vmem:[%s1 + $0xb0] sm:$0xff]
  %v56 = vld [vmem:[%s1 + $0xb8] sm:$0xff]
  %v57 = vld [vmem:[%s1 + $0xc0] sm:$0xff]
  %v58 = vld [vmem:[%s1 + $0xc8] sm:$0xff]
  %v59 = vld [vmem:[%s1 + $0xd0] sm:$0xff]
  %v60 = vld [vmem:[%s1 + $0xd8] sm:$0xff]
  %v61 = vld [vmem:[%s1 + $0xe0] sm:$0xff]
  %v62 = vld [vmem:[%s1 + $0xe8] sm:$0xff]
  %v63 = vld [vmem:[%s1 + $0xf0] sm:$0xff]
  %v64 = vld [vmem:[%s1 + $0xf8] sm:$0xff]
  %v65 = vld [vmem:[%s1 + $0x100] sm:$0xff]
  %v66 = vld [vmem:[%s1 + $0x108] sm:$0xff]
  %v67 = vld [vmem:[%s1 + $0x110] sm:$0xff]
  %v68 = vld [vmem:[%s1 + $0x118] sm:$0xff]
  %v69 = vld [vmem:[%s1 + $0x120] sm:$0xff]
  %v70 = vld [vmem:[%s1 + $0x128] sm:$0xff]
  %v71 = vld [vmem:[%s1 + $0x130] sm:$0xff]
  %v72 = vld [vmem:[%s1 + $0x138] sm:$0xff]
  %v73 = vld [vmem:[%s1 + $0x140] sm:$0xff]
  %v74 = vld [vmem:[%s1 + $0x148] sm:$0xff]
  %v75 = vld [vmem:[%s1 + $0x150] sm:$0xff]
  %v76 = vld [vmem:[%s1 + $0x158] sm:$0xff]
  %v77 = vld [vmem:[%s1 + $0x160] sm:$0xff]
  %v78 = vld [vmem:[%s1 + $0x168] sm:$0xff]
  %v79 = vld [vmem:[%s1 + $0x170] sm:$0xff]
  %v80 = vld [vmem:[%s1 + $0x178] sm:$0xff]
  %v81 = vld [vmem:[%s1 + $0x180] sm:$0xff]
  %v82 = vld [vmem:[%s1 + $0x188] sm:$0xff]
  %v83 = vld [vmem:[%s1 + $0x190] sm:$0xff]
  %v84 = vld [vmem:[%s1 + $0x198] sm:$0xff]
  %v85 = vld [vmem:[%s1 + $0x1a0] sm:$0xff]
  %v86 = vld [vmem:[%s1 + $0x1a8] sm:$0xff]
  %v87 = vld [vmem:[%s1 + $0x1b0] sm:$0xff]
  %v88 = vld [vmem:[%s1 + $0x1b8] sm:$0xff]
  %v89 = vld [vmem:[%s1 + $0x1c0] sm:$0xff]
  %v90 = vld [vmem:[%s1 + $0x1c8] sm:$0xff]
  %v91 = vld [vmem:[%s1 + $0x1d0] sm:$0xff]
  %v92 = vld [vmem:[%s1 + $0x1d8] sm:$0xff]
  %v93 = vld [vmem:[%s1 + $0x1e0] sm:$0xff]
  %v94 = vld [vmem:[%s1 + $0x1e8] sm:$0xff]
  %v95 = vld [vmem:[%s1 + $0x1f0] sm:$0xff]
  %v96 = vld [vmem:[%s1 + $0x1f8] sm:$0xff]
  %97 = vmatprep.subr.mxu0 0.0
  %98 = vmatpush1.msra.mxu0 %v48
  %99 = vmatprep.subr.mxu0 0.0
  %100 = vmatpush1.msra.mxu0 %v47
  %101 = vmatprep.subr.mxu0 0.0
  %102 = vmatpush1.msra.mxu0 %v46
  %103 = vmatprep.subr.mxu0 0.0
  %104 = vmatpush1.msra.mxu0 %v45
  %105 = vmatprep.subr.mxu0 0.0
  %106 = vmatpush1.msra.mxu0 %v44
  %107 = vmatprep.subr.mxu0 0.0
  %108 = vmatpush1.msra.mxu0 %v43
  %109 = vmatprep.subr.mxu0 0.0
  %110 = vmatpush1.msra.mxu0 %v42
  %111 = vmatprep.subr.mxu0 0.0
  %112 = vmatpush1.msra.mxu0 %v41
  %113 = vmatprep.subr.mxu0 0.0
  %114 = vmatpush1.msra.mxu0 %v40
  %115 = vmatprep.subr.mxu0 0.0
  %116 = vmatpush1.msra.mxu0 %v39
  %117 = vmatprep.subr.mxu0 0.0
  %118 = vmatpush1.msra.mxu0 %v38
  %119 = vmatprep.subr.mxu0 0.0
  %120 = vmatpush1.msra.mxu0 %v37
  %121 = vmatprep.subr.mxu0 0.0
  %122 = vmatpush1.msra.mxu0 %v36
  %123 = vmatprep.subr.mxu0 0.0
  %124 = vmatpush1.msra.mxu0 %v35
  %125 = vmatprep.subr.mxu0 0.0
  %126 = vmatpush1.msra.mxu0 %v34
  %127 = vmatprep.subr.mxu0 0.0
  %128 = vmatpush1.msra.mxu0 %v33
  %129 = vmatprep.subr.mxu0 0.0
  %130 = vmatpush2.msra.mxu0 %v64
  %131 = vmatprep.subr.mxu0 0.0
  %132 = vmatpush2.msra.mxu0 %v63
  %133 = vmatprep.subr.mxu0 0.0
  %134 = vmatpush2.msra.mxu0 %v62
  %135 = vmatprep.subr.mxu0 0.0
  %136 = vmatpush2.msra.mxu0 %v61
  %137 = vmatprep.subr.mxu0 0.0
  %138 = vmatpush2.msra.mxu0 %v60
  %139 = vmatprep.subr.mxu0 0.0
  %140 = vmatpush2.msra.mxu0 %v59
  %141 = vmatprep.subr.mxu0 0.0
  %142 = vmatpush2.msra.mxu0 %v58
  %143 = vmatprep.subr.mxu0 0.0
  %144 = vmatpush2.msra.mxu0 %v57
  %145 = vmatprep.subr.mxu0 0.0
  %146 = vmatpush2.msra.mxu0 %v56
  %147 = vmatprep.subr.mxu0 0.0
  %148 = vmatpush2.msra.mxu0 %v55
  %149 = vmatprep.subr.mxu0 0.0
  %150 = vmatpush2.msra.mxu0 %v54
  %151 = vmatprep.subr.mxu0 0.0
  %152 = vmatpush2.msra.mxu0 %v53
  %153 = vmatprep.subr.mxu0 0.0
  %154 = vmatpush2.msra.mxu0 %v52
  %155 = vmatprep.subr.mxu0 0.0
  %156 = vmatpush2.msra.mxu0 %v51
  %157 = vmatprep.subr.mxu0 0.0
  %158 = vmatpush2.msra.mxu0 %v50
  %159 = vmatprep.subr.mxu0 0.0
  %160 = vmatpush2.msra.mxu0 %v49
  %161 = vmatprep.mubr.f32.mxu0 %v18
  %162 = vmatmul.mubr.f32.gmra.mxu0 %v17
  %v163 = vpop.f32.mrf.mxu0
  %v164 = vadd.f32 0.0, %v163
  %v165 = vpop.f32.mrf.mxu0
  %166 = vmatprep.mubr.f32.mxu0 %v22
  %167 = vmatmul.mubr.f32.gmra.mxu0 %v21
  %v168 = vpop.f32.mrf.mxu0
  %v169 = vadd.f32 0.0, %v168
  %v170 = vpop.f32.mrf.mxu0
  %171 = vmatprep.mubr.f32.mxu0 %v26
  %172 = vmatmul.mubr.f32.gmra.mxu0 %v25
  %v173 = vpop.f32.mrf.mxu0
  %v174 = vadd.f32 0.0, %v173
  %v175 = vpop.f32.mrf.mxu0
  %176 = vmatprep.mubr.f32.mxu0 %v30
  %177 = vmatmul.mubr.f32.gmra.mxu0 %v29
  %v178 = vpop.f32.mrf.mxu0
  %v179 = vadd.f32 0.0, %v178
  %v180 = vpop.f32.mrf.mxu0
  %181 = vdwg.mxu0
  %182 = vmatprep.subr.mxu0 0.0
  %183 = vmatpush1.msra.mxu0 %v80
  %184 = vmatprep.subr.mxu0 0.0
  %185 = vmatpush1.msra.mxu0 %v79
  %186 = vmatprep.subr.mxu0 0.0
  %187 = vmatpush1.msra.mxu0 %v78
  %188 = vmatprep.subr.mxu0 0.0
  %189 = vmatpush1.msra.mxu0 %v77
  %190 = vmatprep.subr.mxu0 0.0
  %191 = vmatpush1.msra.mxu0 %v76
  %192 = vmatprep.subr.mxu0 0.0
  %193 = vmatpush1.msra.mxu0 %v75
  %194 = vmatprep.subr.mxu0 0.0
  %195 = vmatpush1.msra.mxu0 %v74
  %196 = vmatprep.subr.mxu0 0.0
  %197 = vmatpush1.msra.mxu0 %v73
  %198 = vmatprep.subr.mxu0 0.0
  %199 = vmatpush1.msra.mxu0 %v72
  %200 = vmatprep.subr.mxu0 0.0
  %201 = vmatpush1.msra.mxu0 %v71
  %202 = vmatprep.subr.mxu0 0.0
  %203 = vmatpush1.msra.mxu0 %v70
  %204 = vmatprep.subr.mxu0 0.0
  %205 = vmatpush1.msra.mxu0 %v69
  %206 = vmatprep.subr.mxu0 0.0
  %207 = vmatpush1.msra.mxu0 %v68
  %208 = vmatprep.subr.mxu0 0.0
  %209 = vmatpush1.msra.mxu0 %v67
  %210 = vmatprep.subr.mxu0 0.0
  %211 = vmatpush1.msra.mxu0 %v66
  %212 = vmatprep.subr.mxu0 0.0
  %213 = vmatpush1.msra.mxu0 %v65
  %214 = vmatprep.subr.mxu0 0.0
  %215 = vmatpush2.msra.mxu0 %v96
  %216 = vmatprep.subr.mxu0 0.0
  %217 = vmatpush2.msra.mxu0 %v95
  %218 = vmatprep.subr.mxu0 0.0
  %219 = vmatpush2.msra.mxu0 %v94
  %220 = vmatprep.subr.mxu0 0.0
  %221 = vmatpush2.msra.mxu0 %v93
  %222 = vmatprep.subr.mxu0 0.0
  %223 = vmatpush2.msra.mxu0 %v92
  %224 = vmatprep.subr.mxu0 0.0
  %225 = vmatpush2.msra.mxu0 %v91
  %226 = vmatprep.subr.mxu0 0.0
  %227 = vmatpush2.msra.mxu0 %v90
  %228 = vmatprep.subr.mxu0 0.0
  %229 = vmatpush2.msra.mxu0 %v89
  %230 = vmatprep.subr.mxu0 0.0
  %231 = vmatpush2.msra.mxu0 %v88
  %232 = vmatprep.subr.mxu0 0.0
  %233 = vmatpush2.msra.mxu0 %v87
  %234 = vmatprep.subr.mxu0 0.0
  %235 = vmatpush2.msra.mxu0 %v86
  %236 = vmatprep.subr.mxu0 0.0
  %237 = vmatpush2.msra.mxu0 %v85
  %238 = vmatprep.subr.mxu0 0.0
  %239 = vmatpush2.msra.mxu0 %v84
  %240 = vmatprep.subr.mxu0 0.0
  %241 = vmatpush2.msra.mxu0 %v83
  %242 = vmatprep.subr.mxu0 0.0
  %243 = vmatpush2.msra.mxu0 %v82
  %244 = vmatprep.subr.mxu0 0.0
  %245 = vmatpush2.msra.mxu0 %v81
  %246 = vmatprep.mubr.f32.mxu0 %v20
  %247 = vmatmul.mubr.f32.gmra.mxu0 %v19
  %v248 = vpop.f32.mrf.mxu0
  %v249 = vadd.f32 %v164, %v248
  %v250 = vpop.f32.mrf.mxu0
  %251 = vmatprep.mubr.f32.mxu0 %v24
  %252 = vmatmul.mubr.f32.gmra.mxu0 %v23
  %v253 = vpop.f32.mrf.mxu0
  %v254 = vadd.f32 %v169, %v253
  %v255 = vpop.f32.mrf.mxu0
  %256 = vmatprep.mubr.f32.mxu0 %v28
  %257 = vmatmul.mubr.f32.gmra.mxu0 %v27
  %v258 = vpop.f32.mrf.mxu0
  %v259 = vadd.f32 %v174, %v258
  %v260 = vpop.f32.mrf.mxu0
  %261 = vmatprep.mubr.f32.mxu0 %v32
  %262 = vmatmul.mubr.f32.gmra.mxu0 %v31
  %v263 = vpop.f32.mrf.mxu0
  %v264 = vadd.f32 %v179, %v263
  %v265 = vpop.f32.mrf.mxu0
  %266 = vdwg.mxu0
  %vm267 = vcmask 261120
  %v268 = vsel %vm267, %v249, 0.0
  %v269 = vsel %vm267, %v254, 0.0
  %v270 = vadd.f32 %v268, %v269
  %v271 = vsel %vm267, %v259, 0.0
  %v272 = vadd.f32 %v270, %v271
  %v273 = vsel %vm267, %v264, 0.0
  %v274 = vadd.f32 %v272, %v273
  %v275 = vrot.slane %v274, 4
  %v276 = vadd.f32 %v274, %v275
  %v277 = vrot.slane %v276, 2
  %v278 = vadd.f32 %v276, %v277
  %v279 = vrot.slane %v278, 1
  %v280 = vadd.f32 %v278, %v279
  %v281 = vrcp.pop 32.0
  %v282 = vmul.f32 %v280, %v281
  %v283 = vsub.f32 %v249, %v282
  %v284 = vsub.f32 %v254, %v282
  %v285 = vsub.f32 %v259, %v282
  %v286 = vsub.f32 %v264, %v282
  %v287 = vmul.f32 %v283, %v283
  %v288 = vmul.f32 %v284, %v284
  %v289 = vmul.f32 %v285, %v285
  %v290 = vmul.f32 %v286, %v286
  %v291 = vsel %vm267, %v287, 0.0
  %v292 = vsel %vm267, %v288, 0.0
  %v293 = vadd.f32 %v291, %v292
  %v294 = vsel %vm267, %v289, 0.0
  %v295 = vadd.f32 %v293, %v294
  %v296 = vsel %vm267, %v290, 0.0
  %v297 = vadd.f32 %v295, %v296
  %v298 = vrot.slane %v297, 4
  %v299 = vadd.f32 %v297, %v298
  %v300 = vrot.slane %v299, 2
  %v301 = vadd.f32 %v299, %v300
  %v302 = vrot.slane %v301, 1
  %v303 = vadd.f32 %v301, %v302
  %v304 = vmul.f32 %v303, %v281
  %v305 = vld [vmem:[%s2] sm:$0x1]
  %v306 = vadd.f32 %v304, 1e-05
  %v307 = vrsqrt.pop %v306
  %v308 = vmul.f32 %v305, %v307
  %v310 = vlaneseq
  %v311 = vshrl.u32 %v310, 7
  %v312 = vsub.s32 0, %v311
  %v313 = vrot.slane %v308, %v312
  %v315 = vmul.f32 %v283, %v313
  %v316 = vmul.f32 %v284, %v313
  %v317 = vmul.f32 %v285, %v313
  %v318 = vmul.f32 %v286, %v313
  %v319 = vld [vmem:[%s3] sm:$0x1]
  %v321 = vlaneseq
  %v322 = vshrl.u32 %v321, 7
  %v323 = vsub.s32 0, %v322
  %v324 = vrot.slane %v319, %v323
  %v326 = vadd.f32 %v315, %v324
  %v327 = vadd.f32 %v316, %v324
  %v328 = vadd.f32 %v317, %v324
  %v329 = vadd.f32 %v318, %v324
  %v330 = vmax.f32 %v326, 0.0
  %v331 = vmax.f32 %v327, 0.0
  %v332 = vmax.f32 %v328, 0.0
  %v333 = vmax.f32 %v329, 0.0
  %334 = vst.msk [vmem:[%s4] sm:$0xff] %vm267, %v330
  %335 = vst.msk [vmem:[%s4 + $0x8] sm:$0xff] %vm267, %v331
  %336 = vst.msk [vmem:[%s4 + $0x10] sm:$0xff] %vm267, %v332
  %337 = vst.msk [vmem:[%s4 + $0x18] sm:$0xff] %vm267, %v333
  // Predicated region
  $region18: #{conv_encoder_forward.11} parent=0 // pred_check
    _
  $region19: #{conv_encoder_forward.11} parent=0 // pred_check_branch
    %339 = sbr.rel (0) target = $region21
  $region20: #{conv_encoder_forward.11} parent=0 // pred_region
    _
  $region21: #{conv_encoder_forward.11} parent=0 // pred_fallthru
    _
  // Predicated region
  $region22: #{conv_encoder_forward.11} parent=0 // pred_check
    _
  $region23: #{conv_encoder_forward.11} parent=0 // pred_check_branch
    %341 = sbr.rel (0) target = $region25
  $region24: #{conv_encoder_forward.11} parent=0 // pred_region
    _
  $region25: #{conv_encoder_forward.11} parent=0 // pred_fallthru
    _

// kernel: conv_encoder_forward.12
$region0: #{conv_encoder_forward.12}
  #allocation0 [shape = 'u32[]', space=smem, size = 0x4, offset = 0x4, fixed_abs, tag = 'smem constant byte address 0x4 - core index']
  #allocation1 [shape = 'u32[144,128]{1,0:T(1,128)}', space=vmem, size = 0x12000, scoped, tag = 'internal scratch']
  %s0 = inlined_call_operand.vmem [shape: f32[8,512], index: 0, kind: input, shape index: {}]
  %s1 = inlined_call_operand.vmem [shape: f32[512,16], index: 1, kind: input, shape index: {}]
  %s2 = inlined_call_operand.vmem [shape: f32[1,16], index: 2, kind: input, shape index: {}]
  %s3 = inlined_call_operand.vmem [shape: f32[1,16], index: 3, kind: input, shape index: {}]
  %s4 = inlined_call_operand.vmem [shape: f32[8,16], index: 4, kind: output, shape index: {}]
  %s5 = sld [smem:[#allocation0]]
  $region26: #{conv_encoder_forward.12} parent=0
    _
  %s7 = ssub.s32 1, %s5
  %s8 = scalar_select 0, %s7, %s5
  // Predicated region
  $region2: #{conv_encoder_forward.12} parent=0 // pred_check
    _
  $region3: #{conv_encoder_forward.12} parent=0 // pred_check_branch
    %10 = sbr.rel (0) target = $region5
  $region4: #{conv_encoder_forward.12} parent=0 // pred_region
    _
  $region5: #{conv_encoder_forward.12} parent=0 // pred_fallthru
    _
  // Predicated region
  $region6: #{conv_encoder_forward.12} parent=0 // pred_check
    _
  $region7: #{conv_encoder_forward.12} parent=0 // pred_check_branch
    %12 = sbr.rel (0) target = $region9
  $region8: #{conv_encoder_forward.12} parent=0 // pred_region
    _
  $region9: #{conv_encoder_forward.12} parent=0 // pred_fallthru
    _
  // Predicated region
  $region10: #{conv_encoder_forward.12} parent=0 // pred_check
    _
  $region11: #{conv_encoder_forward.12} parent=0 // pred_check_branch
    %14 = sbr.rel (0) target = $region13
  $region12: #{conv_encoder_forward.12} parent=0 // pred_region
    _
  $region13: #{conv_encoder_forward.12} parent=0 // pred_fallthru
    _
  // Predicated region
  $region14: #{conv_encoder_forward.12} parent=0 // pred_check
    _
  $region15: #{conv_encoder_forward.12} parent=0 // pred_check_branch
    %16 = sbr.rel (0) target = $region17
  $region16: #{conv_encoder_forward.12} parent=0 // pred_region
    _
  $region17: #{conv_encoder_forward.12} parent=0 // pred_fallthru
    _
  %v17 = vld [vmem:[%s0] sm:$0xff]
  %v18 = vld [vmem:[%s0 + $0x8] sm:$0xff]
  %v19 = vld [vmem:[%s0 + $0x10] sm:$0xff]
  %v20 = vld [vmem:[%s0 + $0x18] sm:$0xff]
  %v21 = vld [vmem:[%s1] sm:$0xff]
  %v22 = vld [vmem:[%s1 + $0x8] sm:$0xff]
  %v23 = vld [vmem:[%s1 + $0x10] sm:$0xff]
  %v24 = vld [vmem:[%s1 + $0x18] sm:$0xff]
  %v25 = vld [vmem:[%s1 + $0x20] sm:$0xff]
  %v26 = vld [vmem:[%s1 + $0x28] sm:$0xff]
  %v27 = vld [vmem:[%s1 + $0x30] sm:$0xff]
  %v28 = vld [vmem:[%s1 + $0x38] sm:$0xff]
  %v29 = vld [vmem:[%s1 + $0x40] sm:$0xff]
  %v30 = vld [vmem:[%s1 + $0x48] sm:$0xff]
  %v31 = vld [vmem:[%s1 + $0x50] sm:$0xff]
  %v32 = vld [vmem:[%s1 + $0x58] sm:$0xff]
  %v33 = vld [vmem:[%s1 + $0x60] sm:$0xff]
  %v34 = vld [vmem:[%s1 + $0x68] sm:$0xff]
  %v35 = vld [vmem:[%s1 + $0x70] sm:$0xff]
  %v36 = vld [vmem:[%s1 + $0x78] sm:$0xff]
  %v37 = vld [vmem:[%s1 + $0x80] sm:$0xff]
  %v38 = vld [vmem:[%s1 + $0x88] sm:$0xff]
  %v39 = vld [vmem:[%s1 + $0x90] sm:$0xff]
  %v40 = vld [vmem:[%s1 + $0x98] sm:$0xff]
  %v41 = vld [vmem:[%s1 + $0xa0] sm:$0xff]
  %v42 = vld [vmem:[%s1 + $0xa8] sm:$0xff]
  %v43 = vld [vmem:[%s1 + $0xb0] sm:$0xff]
  %v44 = vld [vmem:[%s1 + $0xb8] sm:$0xff]
  %v45 = vld [vmem:[%s1 + $0xc0] sm:$0xff]
  %v46 = vld [vmem:[%s1 + $0xc8] sm:$0xff]
  %v47 = vld [vmem:[%s1 + $0xd0] sm:$0xff]
  %v48 = vld [vmem:[%s1 + $0xd8] sm:$0xff]
  %v49 = vld [vmem:[%s1 + $0xe0] sm:$0xff]
  %v50 = vld [vmem:[%s1 + $0xe8] sm:$0xff]
  %v51 = vld [vmem:[%s1 + $0xf0] sm:$0xff]
  %v52 = vld [vmem:[%s1 + $0xf8] sm:$0xff]
  %v53 = vld [vmem:[%s1 + $0x100] sm:$0xff]
  %v54 = vld [vmem:[%s1 + $0x108] sm:$0xff]
  %v55 = vld [vmem:[%s1 + $0x110] sm:$0xff]
  %v56 = vld [vmem:[%s1 + $0x118] sm:$0xff]
  %v57 = vld [vmem:[%s1 + $0x120] sm:$0xff]
  %v58 = vld [vmem:[%s1 + $0x128] sm:$0xff]
  %v59 = vld [vmem:[%s1 + $0x130] sm:$0xff]
  %v60 = vld [vmem:[%s1 + $0x138] sm:$0xff]
  %v61 = vld [vmem:[%s1 + $0x140] sm:$0xff]
  %v62 = vld [vmem:[%s1 + $0x148] sm:$0xff]
  %v63 = vld [vmem:[%s1 + $0x150] sm:$0xff]
  %v64 = vld [vmem:[%s1 + $0x158] sm:$0xff]
  %v65 = vld [vmem:[%s1 + $0x160] sm:$0xff]
  %v66 = vld [vmem:[%s1 + $0x168] sm:$0xff]
  %v67 = vld [vmem:[%s1 + $0x170] sm:$0xff]
  %v68 = vld [vmem:[%s1 + $0x178] sm:$0xff]
  %v69 = vld [vmem:[%s1 + $0x180] sm:$0xff]
  %v70 = vld [vmem:[%s1 + $0x188] sm:$0xff]
  %v71 = vld [vmem:[%s1 + $0x190] sm:$0xff]
  %v72 = vld [vmem:[%s1 + $0x198] sm:$0xff]
  %v73 = vld [vmem:[%s1 + $0x1a0] sm:$0xff]
  %v74 = vld [vmem:[%s1 + $0x1a8] sm:$0xff]
  %v75 = vld [vmem:[%s1 + $0x1b0] sm:$0xff]
  %v76 = vld [vmem:[%s1 + $0x1b8] sm:$0xff]
  %v77 = vld [vmem:[%s1 + $0x1c0] sm:$0xff]
  %v78 = vld [vmem:[%s1 + $0x1c8] sm:$0xff]
  %v79 = vld [vmem:[%s1 + $0x1d0] sm:$0xff]
  %v80 = vld [vmem:[%s1 + $0x1d8] sm:$0xff]
  %v81 = vld [vmem:[%s1 + $0x1e0] sm:$0xff]
  %v82 = vld [vmem:[%s1 + $0x1e8] sm:$0xff]
  %v83 = vld [vmem:[%s1 + $0x1f0] sm:$0xff]
  %v84 = vld [vmem:[%s1 + $0x1f8] sm:$0xff]
  %85 = vmatprep.subr.mxu0 0.0
  %86 = vmatpush1.msra.mxu0 %v36
  %87 = vmatprep.subr.mxu0 0.0
  %88 = vmatpush1.msra.mxu0 %v35
  %89 = vmatprep.subr.mxu0 0.0
  %90 = vmatpush1.msra.mxu0 %v34
  %91 = vmatprep.subr.mxu0 0.0
  %92 = vmatpush1.msra.mxu0 %v33
  %93 = vmatprep.subr.mxu0 0.0
  %94 = vmatpush1.msra.mxu0 %v32
  %95 = vmatprep.subr.mxu0 0.0
  %96 = vmatpush1.msra.mxu0 %v31
  %97 = vmatprep.subr.mxu0 0.0
  %98 = vmatpush1.msra.mxu0 %v30
  %99 = vmatprep.subr.mxu0 0.0
  %100 = vmatpush1.msra.mxu0 %v29
  %101 = vmatprep.subr.mxu0 0.0
  %102 = vmatpush1.msra.mxu0 %v28
  %103 = vmatprep.subr.mxu0 0.0
  %104 = vmatpush1.msra.mxu0 %v27
  %105 = vmatprep.subr.mxu0 0.0
  %106 = vmatpush1.msra.mxu0 %v26
  %107 = vmatprep.subr.mxu0 0.0
  %108 = vmatpush1.msra.mxu0 %v25
  %109 = vmatprep.subr.mxu0 0.0
  %110 = vmatpush1.msra.mxu0 %v24
  %111 = vmatprep.subr.mxu0 0.0
  %112 = vmatpush1.msra.mxu0 %v23
  %113 = vmatprep.subr.mxu0 0.0
  %114 = vmatpush1.msra.mxu0 %v22
  %115 = vmatprep.subr.mxu0 0.0
  %116 = vmatpush1.msra.mxu0 %v21
  %117 = vmatprep.subr.mxu0 0.0
  %118 = vmatpush2.msra.mxu0 %v52
  %119 = vmatprep.subr.mxu0 0.0
  %120 = vmatpush2.msra.mxu0 %v51
  %121 = vmatprep.subr.mxu0 0.0
  %122 = vmatpush2.msra.mxu0 %v50
  %123 = vmatprep.subr.mxu0 0.0
  %124 = vmatpush2.msra.mxu0 %v49
  %125 = vmatprep.subr.mxu0 0.0
  %126 = vmatpush2.msra.mxu0 %v48
  %127 = vmatprep.subr.mxu0 0.0
  %128 = vmatpush2.msra.mxu0 %v47
  %129 = vmatprep.subr.mxu0 0.0
  %130 = vmatpush2.msra.mxu0 %v46
  %131 = vmatprep.subr.mxu0 0.0
  %132 = vmatpush2.msra.mxu0 %v45
  %133 = vmatprep.subr.mxu0 0.0
  %134 = vmatpush2.msra.mxu0 %v44
  %135 = vmatprep.subr.mxu0 0.0
  %136 = vmatpush2.msra.mxu0 %v43
  %137 = vmatprep.subr.mxu0 0.0
  %138 = vmatpush2.msra.mxu0 %v42
  %139 = vmatprep.subr.mxu0 0.0
  %140 = vmatpush2.msra.mxu0 %v41
  %141 = vmatprep.subr.mxu0 0.0
  %142 = vmatpush2.msra.mxu0 %v40
  %143 = vmatprep.subr.mxu0 0.0
  %144 = vmatpush2.msra.mxu0 %v39
  %145 = vmatprep.subr.mxu0 0.0
  %146 = vmatpush2.msra.mxu0 %v38
  %147 = vmatprep.subr.mxu0 0.0
  %148 = vmatpush2.msra.mxu0 %v37
  %149 = vmatprep.mubr.f32.mxu0 %v18
  %150 = vmatmul.mubr.f32.gmra.mxu0 %v17
  %v151 = vpop.f32.mrf.mxu0
  %v152 = vadd.f32 0.0, %v151
  %v153 = vpop.f32.mrf.mxu0
  %154 = vdwg.mxu0
  %155 = vmatprep.subr.mxu0 0.0
  %156 = vmatpush1.msra.mxu0 %v68
  %157 = vmatprep.subr.mxu0 0.0
  %158 = vmatpush1.msra.mxu0 %v67
  %159 = vmatprep.subr.mxu0 0.0
  %160 = vmatpush1.msra.mxu0 %v66
  %161 = vmatprep.subr.mxu0 0.0
  %162 = vmatpush1.msra.mxu0 %v65
  %163 = vmatprep.subr.mxu0 0.0
  %164 = vmatpush1.msra.mxu0 %v64
  %165 = vmatprep.subr.mxu0 0.0
  %166 = vmatpush1.msra.mxu0 %v63
  %167 = vmatprep.subr.mxu0 0.0
  %168 = vmatpush1.msra.mxu0 %v62
  %169 = vmatprep.subr.mxu0 0.0
  %170 = vmatpush1.msra.mxu0 %v61
  %171 = vmatprep.subr.mxu0 0.0
  %172 = vmatpush1.msra.mxu0 %v60
  %173 = vmatprep.subr.mxu0 0.0
  %174 = vmatpush1.msra.mxu0 %v59
  %175 = vmatprep.subr.mxu0 0.0
  %176 = vmatpush1.msra.mxu0 %v58
  %177 = vmatprep.subr.mxu0 0.0
  %178 = vmatpush1.msra.mxu0 %v57
  %179 = vmatprep.subr.mxu0 0.0
  %180 = vmatpush1.msra.mxu0 %v56
  %181 = vmatprep.subr.mxu0 0.0
  %182 = vmatpush1.msra.mxu0 %v55
  %183 = vmatprep.subr.mxu0 0.0
  %184 = vmatpush1.msra.mxu0 %v54
  %185 = vmatprep.subr.mxu0 0.0
  %186 = vmatpush1.msra.mxu0 %v53
  %187 = vmatprep.subr.mxu0 0.0
  %188 = vmatpush2.msra.mxu0 %v84
  %189 = vmatprep.subr.mxu0 0.0
  %190 = vmatpush2.msra.mxu0 %v83
  %191 = vmatprep.subr.mxu0 0.0
  %192 = vmatpush2.msra.mxu0 %v82
  %193 = vmatprep.subr.mxu0 0.0
  %194 = vmatpush2.msra.mxu0 %v81
  %195 = vmatprep.subr.mxu0 0.0
  %196 = vmatpush2.msra.mxu0 %v80
  %197 = vmatprep.subr.mxu0 0.0
  %198 = vmatpush2.msra.mxu0 %v79
  %199 = vmatprep.subr.mxu0 0.0
  %200 = vmatpush2.msra.mxu0 %v78
  %201 = vmatprep.subr.mxu0 0.0
  %202 = vmatpush2.msra.mxu0 %v77
  %203 = vmatprep.subr.mxu0 0.0
  %204 = vmatpush2.msra.mxu0 %v76
  %205 = vmatprep.subr.mxu0 0.0
  %206 = vmatpush2.msra.mxu0 %v75
  %207 = vmatprep.subr.mxu0 0.0
  %208 = vmatpush2.msra.mxu0 %v74
  %209 = vmatprep.subr.mxu0 0.0
  %210 = vmatpush2.msra.mxu0 %v73
  %211 = vmatprep.subr.mxu0 0.0
  %212 = vmatpush2.msra.mxu0 %v72
  %213 = vmatprep.subr.mxu0 0.0
  %214 = vmatpush2.msra.mxu0 %v71
  %215 = vmatprep.subr.mxu0 0.0
  %216 = vmatpush2.msra.mxu0 %v70
  %217 = vmatprep.subr.mxu0 0.0
  %218 = vmatpush2.msra.mxu0 %v69
  %219 = vmatprep.mubr.f32.mxu0 %v20
  %220 = vmatmul.mubr.f32.gmra.mxu0 %v19
  %v221 = vpop.f32.mrf.mxu0
  %v222 = vadd.f32 %v152, %v221
  %v223 = vpop.f32.mrf.mxu0
  %224 = vdwg.mxu0
  %vm225 = vcmask 130048
  %v226 = vsel %vm225, %v222, 0.0
  %v227 = vrot.slane %v226, 4
  %v228 = vadd.f32 %v226, %v227
  %v229 = vrot.slane %v228, 2
  %v230 = vadd.f32 %v228, %v229
  %v231 = vrot.slane %v230, 1
  %v232 = vadd.f32 %v230, %v231
  %v233 = vrcp.pop 8.0
  %v234 = vmul.f32 %v232, %v233
  %v235 = vsub.f32 %v222, %v234
  %v236 = vmul.f32 %v235, %v235
  %v237 = vsel %vm225, %v236, 0.0
  %v238 = vrot.slane %v237, 4
  %v239 = vadd.f32 %v237, %v238
  %v240 = vrot.slane %v239, 2
  %v241 = vadd.f32 %v239, %v240
  %v242 = vrot.slane %v241, 1
  %v243 = vadd.f32 %v241, %v242
  %v244 = vmul.f32 %v243, %v233
  %v245 = vld [vmem:[%s2] sm:$0x1]
  %v246 = vadd.f32 %v244, 1e-05
  %v247 = vrsqrt.pop %v246
  %v248 = vmul.f32 %v245, %v247
  %v250 = vlaneseq
  %v251 = vshrl.u32 %v250, 7
  %v252 = vsub.s32 0, %v251
  %v253 = vrot.slane %v248, %v252
  %v255 = vmul.f32 %v235, %v253
  %v256 = vld [vmem:[%s3] sm:$0x1]
  %v258 = vlaneseq
  %v259 = vshrl.u32 %v258, 7
  %v260 = vsub.s32 0, %v259
  %v261 = vrot.slane %v256, %v260
  %v263 = vadd.f32 %v255, %v261
  %v264 = vmax.f32 %v263, 0.0
  %265 = vst.msk [vmem:[%s4] sm:$0xff] %vm225, %v264
  // Predicated region
  $region18: #{conv_encoder_forward.12} parent=0 // pred_check
    _
  $region19: #{conv_encoder_forward.12} parent=0 // pred_check_branch
    %267 = sbr.rel (0) target = $region21
  $region20: #{conv_encoder_forward.12} parent=0 // pred_region
    _
  $region21: #{conv_encoder_forward.12} parent=0 // pred_fallthru
    _
  // Predicated region
  $region22: #{conv_encoder_forward.12} parent=0 // pred_check
    _
  $region23: #{conv_encoder_forward.12} parent=0 // pred_check_branch
    %269 = sbr.rel (0) target = $region25
  $region24: #{conv_encoder_forward.12} parent=0 // pred_region
    _
  $region25: #{conv_encoder_forward.12} parent=0 // pred_fallthru
    _

// kernel: conv_encoder_forward.13
$region0: #{conv_encoder_forward.13}
  #allocation0 [shape = 'u32[]', space=smem, size = 0x4, offset = 0x4, fixed_abs, tag = 'smem constant byte address 0x4 - core index']
  #allocation1 [shape = 'u32[144,128]{1,0:T(1,128)}', space=vmem, size = 0x12000, scoped, tag = 'internal scratch']
  %s0 = inlined_call_operand.vmem [shape: f32[2,64], index: 0, kind: input, shape index: {}]
  %s1 = inlined_call_operand.vmem [shape: f32[8,64], index: 1, kind: input, shape index: {}]
  %s2 = inlined_call_operand.vmem [shape: f32[1,8], index: 2, kind: input, shape index: {}]
  %s3 = inlined_call_operand.hbm [shape: f32[2,8], index: 3, kind: output, shape index: {}]
  %s4 = sld [smem:[#allocation0]]
  $region22: #{conv_encoder_forward.13} parent=0
    _
  %s6 = ssub.s32 1, %s4
  %s7 = scalar_select 0, %s6, %s4
  $region1: #{conv_encoder_forward.13} parent=0
    #allocation2 [shape = 'u8[1024]{0}', space=vmem, size = 0x400, scoped, tag = 'output window, operand 0, single buffered']
    #allocation3 [shape = 's32[1]{0}', space=sflag, size = 0x4, scoped, tag = 'scoped memory for conv_encoder_forward.13']
    %8 = vsyncpa [#allocation3], 0
    // Predicated region
    $region2: #{conv_encoder_forward.13} parent=1 // pred_check
      _
    $region3: #{conv_encoder_forward.13} parent=1 // pred_check_branch
      %10 = sbr.rel (0) target = $region5
    $region4: #{conv_encoder_forward.13} parent=1 // pred_region
      _
    $region5: #{conv_encoder_forward.13} parent=1 // pred_fallthru
      _
    // Predicated region
    $region6: #{conv_encoder_forward.13} parent=1 // pred_check
      _
    $region7: #{conv_encoder_forward.13} parent=1 // pred_check_branch
      %12 = sbr.rel (0) target = $region9
    $region8: #{conv_encoder_forward.13} parent=1 // pred_region
      _
    $region9: #{conv_encoder_forward.13} parent=1 // pred_fallthru
      _
    // Predicated region
    $region10: #{conv_encoder_forward.13} parent=1 // pred_check
      _
    $region11: #{conv_encoder_forward.13} parent=1 // pred_check_branch
      %14 = sbr.rel (0) target = $region13
    $region12: #{conv_encoder_forward.13} parent=1 // pred_region
      _
    $region13: #{conv_encoder_forward.13} parent=1 // pred_fallthru
      _
    %v15 = vld [vmem:[%s0] sm:$0x3]
    %v16 = vld [vmem:[%s1] sm:$0xff]
    %v17 = vld [vmem:[%s2] sm:$0x1]
    %v19 = vlaneseq
    %v20 = vshrl.u32 %v19, 7
    %v21 = vsub.s32 0, %v20
    %v22 = vrot.slane %v17, %v21
    %vm24 = vcmask 523264
    %v26 = vsel %vm24, %v15, 0
    %v29 = vsel %vm24, %v16, 0
    %31 = vmatprep.subr.mxu0 0.0
    %32 = vmatpush1.xpose.msra.mxu0 0.0
    %33 = vmatprep.subr.mxu0 0.0
    %34 = vmatpush1.xpose.msra.mxu0 0.0
    %35 = vmatprep.subr.mxu0 0.0
    %36 = vmatpush1.xpose.msra.mxu0 0.0
    %37 = vmatprep.subr.mxu0 0.0
    %38 = vmatpush1.xpose.msra.mxu0 0.0
    %39 = vmatprep.subr.mxu0 0.0
    %40 = vmatpush1.xpose.msra.mxu0 0.0
    %41 = vmatprep.subr.mxu0 0.0
    %42 = vmatpush1.xpose.msra.mxu0 0.0
    %43 = vmatprep.subr.mxu0 0.0
    %44 = vmatpush1.xpose.msra.mxu0 0.0
    %45 = vmatprep.subr.mxu0 0.0
    %46 = vmatpush1.xpose.msra.mxu0 0.0
    %47 = vmatprep.subr.mxu0 0.0
    %48 = vmatpush1.xpose.msra.mxu0 0.0
    %49 = vmatprep.subr.mxu0 0.0
    %50 = vmatpush1.xpose.msra.mxu0 0.0
    %51 = vmatprep.subr.mxu0 0.0
    %52 = vmatpush1.xpose.msra.mxu0 0.0
    %53 = vmatprep.subr.mxu0 0.0
    %54 = vmatpush1.xpose.msra.mxu0 0.0
    %55 = vmatprep.subr.mxu0 0.0
    %56 = vmatpush1.xpose.msra.mxu0 0.0
    %57 = vmatprep.subr.mxu0 0.0
    %58 = vmatpush1.xpose.msra.mxu0 0.0
    %59 = vmatprep.subr.mxu0 0.0
    %60 = vmatpush1.xpose.msra.mxu0 0.0
    %61 = vmatprep.subr.mxu0 0.0
    %62 = vmatpush1.xpose.msra.mxu0 %v29
    %63 = vmatprep.subr.mxu0 0.0
    %64 = vmatpush2.xpose.msra.mxu0 0.0
    %65 = vmatprep.subr.mxu0 0.0
    %66 = vmatpush2.xpose.msra.mxu0 0.0
    %67 = vmatprep.subr.mxu0 0.0
    %68 = vmatpush2.xpose.msra.mxu0 0.0
    %69 = vmatprep.subr.mxu0 0.0
    %70 = vmatpush2.xpose.msra.mxu0 0.0
    %71 = vmatprep.subr.mxu0 0.0
    %72 = vmatpush2.xpose.msra.mxu0 0.0
    %73 = vmatprep.subr.mxu0 0.0
    %74 = vmatpush2.xpose.msra.mxu0 0.0
    %75 = vmatprep.subr.mxu0 0.0
    %76 = vmatpush2.xpose.msra.mxu0 0.0
    %77 = vmatprep.subr.mxu0 0.0
    %78 = vmatpush2.xpose.msra.mxu0 0.0
    %79 = vmatprep.subr.mxu0 0.0
    %80 = vmatpush2.xpose.msra.mxu0 0.0
    %81 = vmatprep.subr.mxu0 0.0
    %82 = vmatpush2.xpose.msra.mxu0 0.0
    %83 = vmatprep.subr.mxu0 0.0
    %84 = vmatpush2.xpose.msra.mxu0 0.0
    %85 = vmatprep.subr.mxu0 0.0
    %86 = vmatpush2.xpose.msra.mxu0 0.0
    %87 = vmatprep.subr.mxu0 0.0
    %88 = vmatpush2.xpose.msra.mxu0 0.0
    %89 = vmatprep.subr.mxu0 0.0
    %90 = vmatpush2.xpose.msra.mxu0 0.0
    %91 = vmatprep.subr.mxu0 0.0
    %92 = vmatpush2.xpose.msra.mxu0 0.0
    %93 = vmatprep.subr.mxu0 0.0
    %94 = vmatpush2.xpose.msra.mxu0 0.0
    %95 = vmatprep.mubr.f32.mxu0 0.0
    %96 = vmatmul.mubr.f32.gmra.mxu0 %v26
    %v97 = vpop.f32.mrf.mxu0
    %v98 = vadd.f32 %v22, %v97
    %v99 = vpop.f32.mrf.mxu0
    %100 = vdwg.mxu0
    %v101 = vmul.f32 %v98, %v98
    %vm102 = vcmask 58368
    %v103 = vsel %vm102, %v101, 0.0
    %104 = vadd.xlane.f32.xlu0 %v103
    %v105 = vpop.xlane.xlu0 %104
    %v106 = vrsqrt.pop %v105
    %v107 = vmul.f32 %v105, %v106
    %vm108 = vcmp.eq.f32.partialorder %v105, inf
    %v109 = vsel %vm108, %v105, %v107
    %vm110 = vcmp.eq.f32.partialorder %v105, 0.0
    %v111 = vand.u32 %v105, 2147483648
    %v112 = vsel %vm110, %v111, %v109
    %v113 = vmax.f32 %v112, 1e-12
    %v114 = vrcp.pop %v113
    %v115 = vmul.f32 %v98, %v114
    %116 = vst.msk [vmem:[#allocation2] sm:$0x3] %vm102, %v115
    // Predicated region
    $region14: #{conv_encoder_forward.13} parent=1 // pred_check
      _
    $region15: #{conv_encoder_forward.13} parent=1 // pred_check_branch
      %118 = sbr.rel (0) target = $region17
    $region16: #{conv_encoder_forward.13} parent=1 // pred_region
      %s120 = ssub.s32 32, 32
      %121 = vsyncadd [#allocation3], %s120
      %s123 = sshll.u32 [#allocation2], 4
      %s124 = int_to_ptr.vmem [resolvable:$true] %s123
      %126 = dma.vmem_to_hbm [thread:$0]  %s124, 32, %s3, [#allocation3]
    $region17: #{conv_encoder_forward.13} parent=1 // pred_fallthru
      _
    // Predicated region
    $region18: #{conv_encoder_forward.13} parent=1 // pred_check
      _
    $region19: #{conv_encoder_forward.13} parent=1 // pred_check_branch
      %128 = sbr.rel (0) target = $region21
    $region20: #{conv_encoder_forward.13} parent=1 // pred_region
      %129 = dma.done [#allocation3], 32
    $region21: #{conv_encoder_forward.13} parent=1 // pred_fallthru
      _
    %130 = vsyncpa [#allocation3], 1

</llo_original>
